<compile_context>
chip_gen: v7x
topology: tpu7x:2x2x1
jax: 0.10.0
libtpu: 0.0.40
codegen_flags: <defaults>
</compile_context>

<pallas_src>
import math

import jax
import jax.numpy as jnp
from jax.experimental import pallas as pl
from jax.experimental.pallas import tpu as pltpu

# ---- architecture constants (from MRCHead / nn.TransformerEncoderLayer defaults) ----
D_MODEL = 32          # hf_model.config.hidden_size (small synthetic value)
NHEAD = 4             # hf_model.config.num_attention_heads
HEAD_DIM = D_MODEL // NHEAD
DIM_FF = 2048         # nn.TransformerEncoderLayer default dim_feedforward
NUM_LABELS = 3        # MRCHead(num_labels=3)
LN_EPS = 1e-5         # nn.TransformerEncoderLayer default layer_norm_eps
CLS_PAD = 8           # classifier output padded to 8 lanes (sliced back to 3 in wrapper)

# packed small-weight layout (lanes of w_small, all bf16):
#   [ Wqkv^T (3D) | Wo^T (D) | Wcls^T padded (CLS_PAD) | HSUM (D) ]
W_SMALL_WIDTH = 3 * D_MODEL + D_MODEL + CLS_PAD + D_MODEL
# packed vector layout (f32):
#   row0 = [ bqkv (3D) | bo (D) | bcls padded (CLS_PAD) ]
#   row1 = [ ln1w | ln1b | ln2w | ln2b | b2 ]   (5*D)
V_SMALL_WIDTH = max(4 * D_MODEL + CLS_PAD, 5 * D_MODEL)


def _layer_norm(v, w, b):
    mu = jnp.mean(v, axis=-1, keepdims=True)
    var = jnp.mean((v - mu) ** 2, axis=-1, keepdims=True)
    return (v - mu) * jax.lax.rsqrt(var + LN_EPS) * w + b


def mrc_head_kernel(x_ref, w_small_ref, v_small_ref, w1_ref, b1_ref, w2_ref, out_ref):
    L, TN, D = x_ref.shape            # one tile: all of L, TILE_N of the independent axis
    R = L * TN                        # token rows in this tile, ordered r = l*TN + n

    # ---- unpack resident weights (bf16) and vectors (f32) ----
    w_small = w_small_ref[...]
    wqkv = w_small[:, 0:3 * D]                         # (D, 3D)  [Wq|Wk|Wv]^T, q-scale folded
    wo = w_small[:, 3 * D:4 * D]                       # (D, D)   Wo^T
    wcls = w_small[:, 4 * D:4 * D + CLS_PAD]           # (D, 8)   Wcls^T zero-padded
    hsum = w_small[:, 4 * D + CLS_PAD:4 * D + CLS_PAD + D]   # (D, D) within-head sum (0/1)

    v_small = v_small_ref[...]
    bqkv = v_small[0:1, 0:3 * D]
    bo = v_small[0:1, 3 * D:4 * D]
    bcls = v_small[0:1, 4 * D:4 * D + CLS_PAD]
    ln1w = v_small[1:2, 0:D]
    ln1b = v_small[1:2, D:2 * D]
    ln2w = v_small[1:2, 2 * D:3 * D]
    ln2b = v_small[1:2, 3 * D:4 * D]
    b2 = v_small[1:2, 4 * D:5 * D]

    # leading-dim collapse only (sublane dim TN is a multiple of 8) -> no relayout
    x2d = x_ref[...].astype(jnp.float32).reshape(R, D)

    # ---- fused QKV projection: one (R, D) @ (D, 3D) bf16 matmul, f32 accumulate ----
    qkv = jnp.dot(x2d.astype(jnp.bfloat16), wqkv,
                  preferred_element_type=jnp.float32) + bqkv          # (R, 3D)
    q3 = qkv[:, 0:D].reshape(L, TN, D)      # q already scaled by 1/sqrt(head_dim)
    k3 = qkv[:, D:2 * D].reshape(L, TN, D)
    v3 = qkv[:, 2 * D:3 * D].reshape(L, TN, D)

    # ---- attention over dim 0 (eval-mode dropout = identity) ----
    # prod[l, m, n, d] = q[l, n, d] * k[m, n, d]   (leading-axis broadcasts only)
    prod = q3[:, None, :, :] * k3[None, :, :, :]                       # (L, L, TN, D) f32
    # one matmul against the block-diagonal HSUM matrix sums within each head and leaves
    # the head score replicated across that head's hd lanes ("expanded" scores): no
    # head-split reshapes, no per-batch K=8 matmuls.
    s = jnp.dot(prod.reshape(L * L * TN, D).astype(jnp.bfloat16), hsum,
                preferred_element_type=jnp.float32).reshape(L, L, TN, D)
    # softmax over the key axis m (axis=1, a leading axis -> VPU/EUP only)
    s = s - jnp.max(s, axis=1, keepdims=True)
    p = jnp.exp(s)
    p = p * pl.reciprocal(jnp.sum(p, axis=1, keepdims=True), approx=True)
    # PV: broadcast multiply + leading-axis sum (replicated weights line up with v lanes)
    o3 = jnp.sum(p * v3[None, :, :, :], axis=1)                        # (L, TN, D)

    attn = jnp.dot(o3.reshape(R, D).astype(jnp.bfloat16), wo,
                   preferred_element_type=jnp.float32) + bo            # (R, D)

    # ---- residual + LayerNorm1 (f32 elementwise) ----
    h1 = _layer_norm(x2d + attn, ln1w, ln1b)

    # ---- feed-forward (ReLU); bf16 MXU operands, f32 accumulate & elementwise ----
    ff = jnp.dot(h1.astype(jnp.bfloat16), w1_ref[...],
                 preferred_element_type=jnp.float32) + b1_ref[...]     # (R, FF)
    ff = jnp.maximum(ff, 0.0)
    ff = jnp.dot(ff.astype(jnp.bfloat16), w2_ref[...],
                 preferred_element_type=jnp.float32) + b2              # (R, D)

    # ---- residual + LayerNorm2 ----
    h2 = _layer_norm(h1 + ff, ln2w, ln2b)

    # ---- classifier: Linear(d_model -> num_labels), narrow (8-lane) padded store ----
    logits = jnp.dot(h2.astype(jnp.bfloat16), wcls,
                     preferred_element_type=jnp.float32) + bcls        # (R, CLS_PAD)
    out_ref[...] = logits.reshape(L, TN, CLS_PAD)


def _choose_tile_n(L, N, target_rows=512):
    """Largest TILE_N that divides N, is a multiple of 8, and keeps L*TILE_N ~ target."""
    if N * L <= target_rows:
        return N
    cap = max(8, target_rows // max(L, 1))
    t = (min(N, cap) // 8) * 8
    while t >= 8:
        if N % t == 0:
            return t
        t -= 8
    return N   # fallback: single tile (always legal)


def mrc_head_forward(hidden_states, params):
    """MRCHead.forward in eval mode. hidden_states: (L, N, D). Returns (L, N, NUM_LABELS)."""
    L, N, D = hidden_states.shape
    assert D == D_MODEL
    w_small, v_small, w1, b1, w2 = params

    tile_n = _choose_tile_n(L, N)
    grid = (N // tile_n,)
    tokens = L * N

    cost = pl.CostEstimate(
        flops=int(2 * tokens * D * (3 * D + D + CLS_PAD + 2 * DIM_FF)
                  + 2 * (L * L * N) * D * D        # score head-sum matmul
                  + 2 * (L * L * N) * D),          # PV MACs
        transcendentals=int(L * L * N * D),        # exp on expanded scores
        bytes_accessed=int(hidden_states.size * hidden_states.dtype.itemsize
                           + w_small.size * 2 + v_small.size * 4
                           + w1.size * 2 + b1.size * 4 + w2.size * 2
                           + tokens * CLS_PAD * 4),
    )

    out_pad = pl.pallas_call(
        mrc_head_kernel,
        grid=grid,
        in_specs=[
            pl.BlockSpec((L, tile_n, D), lambda j: (0, j, 0)),
            # weights: full-array blocks with constant index_map -> stay resident in VMEM
            pl.BlockSpec(w_small.shape, lambda j: (0, 0)),
            pl.BlockSpec(v_small.shape, lambda j: (0, 0)),
            pl.BlockSpec(w1.shape, lambda j: (0, 0)),
            pl.BlockSpec(b1.shape, lambda j: (0, 0)),
            pl.BlockSpec(w2.shape, lambda j: (0, 0)),
        ],
        out_specs=pl.BlockSpec((L, tile_n, CLS_PAD), lambda j: (0, j, 0)),
        out_shape=jax.ShapeDtypeStruct((L, N, CLS_PAD), jnp.float32),
        compiler_params=pltpu.CompilerParams(
            dimension_semantics=("parallel",),
            vmem_limit_bytes=64 * 1024 * 1024,
        ),
        cost_estimate=cost,
    )(hidden_states, w_small, v_small, w1, b1, w2)
    return out_pad[..., :NUM_LABELS]


def multi_task_mrc_forward(hidden_states_last, reranker_logits, params,
                           task_list=("mrc", "reranker")):
    """Eval-mode branch of MultiTaskMRCModel.forward."""
    out = {"loss": None, "reranker_logits": None, "mrc_logits": None}
    if "reranker" in task_list:
        out["reranker_logits"] = reranker_logits          # passthrough (eval mode)
    if "mrc" in task_list:
        out["mrc_logits"] = mrc_head_forward(hidden_states_last, params)
    return out


def pack_params(in_proj_w, in_proj_b, out_proj_w, out_proj_b,
                w1, b1, w2, b2, ln1w, ln1b, ln2w, ln2b, wcls, bcls):
    """Host-side consolidation: fold q-scale, pre-transpose, pad, cast, pack into 5 arrays."""
    D, FF, C = D_MODEL, DIM_FF, NUM_LABELS
    scale = 1.0 / math.sqrt(HEAD_DIM)

    # fold 1/sqrt(head_dim) into Wq / bq (PyTorch layout: rows 0..D-1 of in_proj are Wq)
    in_proj_w = in_proj_w.at[:D, :].multiply(scale)
    in_proj_b = in_proj_b.at[:D].multiply(scale)

    wqkv_t = in_proj_w.T                                         # (D, 3D)
    wo_t = out_proj_w.T                                          # (D, D)
    wcls_pad = jnp.zeros((D, CLS_PAD), jnp.float32).at[:, :C].set(wcls.T)
    head_id = jnp.arange(D) // HEAD_DIM
    hsum = (head_id[:, None] == head_id[None, :]).astype(jnp.float32)   # (D, D) block-diag
    w_small = jnp.concatenate([wqkv_t, wo_t, wcls_pad, hsum],
                              axis=1).astype(jnp.bfloat16)       # (D, W_SMALL_WIDTH)

    bcls_pad = jnp.zeros((CLS_PAD,), jnp.float32).at[:C].set(bcls)
    row0 = jnp.concatenate([in_proj_b, out_proj_b, bcls_pad])    # (4D + CLS_PAD,)
    row1 = jnp.concatenate([ln1w, ln1b, ln2w, ln2b, b2])         # (5D,)
    v_small = jnp.zeros((8, V_SMALL_WIDTH), jnp.float32)
    v_small = v_small.at[0, :row0.shape[0]].set(row0)
    v_small = v_small.at[1, :row1.shape[0]].set(row1)

    w1_bf = w1.T.astype(jnp.bfloat16)                            # (D, FF)
    w2_bf = w2.T.astype(jnp.bfloat16)                            # (FF, D)
    b1_r = b1.reshape(1, FF).astype(jnp.float32)
    return [w_small, v_small, w1_bf, b1_r, w2_bf]


def init_params(key):
    """Deterministic synthetic MRCHead parameters (PyTorch layout), then packed."""
    D, FF, C = D_MODEL, DIM_FF, NUM_LABELS
    ks = jax.random.split(key, 10)
    n = lambda k, shape, s=0.02: (s * jax.random.normal(k, shape)).astype(jnp.float32)

    in_proj_w = n(ks[0], (3 * D, D))       # packed [Wq; Wk; Wv], PyTorch MHA layout
    in_proj_b = n(ks[1], (3 * D,), 0.01)
    out_proj_w = n(ks[2], (D, D))
    out_proj_b = n(ks[3], (D,), 0.01)
    w1 = n(ks[4], (FF, D)); b1 = n(ks[5], (FF,), 0.01)
    w2 = n(ks[6], (D, FF)); b2 = n(ks[7], (D,), 0.01)
    wcls = n(ks[8], (C, D)); bcls = n(ks[9], (C,), 0.01)
    ln1w = jnp.ones((D,), jnp.float32); ln1b = jnp.zeros((D,), jnp.float32)
    ln2w = jnp.ones((D,), jnp.float32); ln2b = jnp.zeros((D,), jnp.float32)

    return pack_params(in_proj_w, in_proj_b, out_proj_w, out_proj_b,
                       w1, b1, w2, b2, ln1w, ln1b, ln2w, ln2b, wcls, bcls)


if __name__ == "__main__":
    key = jax.random.PRNGKey(0)
    k_hid, k_rr, k_par = jax.random.split(key, 3)

    B, S = 2, 8   # HF last hidden state (B, S, D); attention runs over dim 0 (see layout)
    hidden_states_last = jax.random.normal(k_hid, (B, S, D_MODEL), jnp.float32)
    reranker_logits = jax.random.normal(k_rr, (B, 1), jnp.float32)   # hf_model SeqCls logits
    params = init_params(k_par)

    out = multi_task_mrc_forward(hidden_states_last, reranker_logits, params,
                                 task_list=("mrc", "reranker"))
    mrc_logits = jax.block_until_ready(out["mrc_logits"])
    jax.block_until_ready(out["reranker_logits"])

    assert mrc_logits.shape == (B, S, NUM_LABELS)
    assert mrc_logits.dtype == jnp.float32
    assert bool(jnp.all(jnp.isfinite(mrc_logits)))
    print("KERNEL_OK")
</pallas_src>

<mosaic_0001>
module attributes {stable_mosaic.version = 11 : i64} {
  func.func @mrc_head_kernel(%arg0: i32, %arg1: memref<2x8x32xf32, #tpu.memory_space<vmem>>, %arg2: memref<32x168xbf16, #tpu.memory_space<vmem>>, %arg3: memref<8x160xf32, #tpu.memory_space<vmem>>, %arg4: memref<32x2048xbf16, #tpu.memory_space<vmem>>, %arg5: memref<1x2048xf32, #tpu.memory_space<vmem>>, %arg6: memref<2048x32xbf16, #tpu.memory_space<vmem>>, %arg7: memref<2x8x8xf32, #tpu.memory_space<vmem>>) attributes {dimension_semantics = [#tpu.dimension_semantics<parallel>], iteration_bounds = array<i64: 1>, scalar_prefetch = 0 : i64, scratch_operands = 0 : i64, tpu.core_type = #tpu.core_type<tc>, window_params = [{transform_indices = @transform_0, window_bounds = array<i64: 2, 8, 32>}, {pipeline_mode = #tpu.pipeline_mode<synchronous>, transform_indices = @transform_1, window_bounds = array<i64: 32, 168>}, {pipeline_mode = #tpu.pipeline_mode<synchronous>, transform_indices = @transform_2, window_bounds = array<i64: 8, 160>}, {pipeline_mode = #tpu.pipeline_mode<synchronous>, transform_indices = @transform_3, window_bounds = array<i64: 32, 2048>}, {pipeline_mode = #tpu.pipeline_mode<synchronous>, transform_indices = @transform_4, window_bounds = array<i64: 1, 2048>}, {pipeline_mode = #tpu.pipeline_mode<synchronous>, transform_indices = @transform_5, window_bounds = array<i64: 2048, 32>}, {transform_indices = @transform_6, window_bounds = array<i64: 2, 8, 8>}]} {
    %c0 = arith.constant 0 : index
    %c0_0 = arith.constant 0 : index
    %0 = vector.load %arg2[%c0, %c0_0] : memref<32x168xbf16, #tpu.memory_space<vmem>>, vector<32x168xbf16>
    %1 = vector.extract_strided_slice %0 {offsets = [0, 0], sizes = [32, 96], strides = [1, 1]} : vector<32x168xbf16> to vector<32x96xbf16>
    %2 = vector.extract_strided_slice %0 {offsets = [0, 96], sizes = [32, 32], strides = [1, 1]} : vector<32x168xbf16> to vector<32x32xbf16>
    %3 = vector.extract_strided_slice %0 {offsets = [0, 128], sizes = [32, 8], strides = [1, 1]} : vector<32x168xbf16> to vector<32x8xbf16>
    %4 = vector.extract_strided_slice %0 {offsets = [0, 136], sizes = [32, 32], strides = [1, 1]} : vector<32x168xbf16> to vector<32x32xbf16>
    %c0_1 = arith.constant 0 : index
    %c0_2 = arith.constant 0 : index
    %5 = vector.load %arg3[%c0_1, %c0_2] : memref<8x160xf32, #tpu.memory_space<vmem>>, vector<8x160xf32>
    %6 = vector.extract_strided_slice %5 {offsets = [0, 0], sizes = [1, 96], strides = [1, 1]} : vector<8x160xf32> to vector<1x96xf32>
    %7 = vector.extract_strided_slice %5 {offsets = [0, 96], sizes = [1, 32], strides = [1, 1]} : vector<8x160xf32> to vector<1x32xf32>
    %8 = vector.extract_strided_slice %5 {offsets = [0, 128], sizes = [1, 8], strides = [1, 1]} : vector<8x160xf32> to vector<1x8xf32>
    %9 = vector.extract_strided_slice %5 {offsets = [1, 0], sizes = [1, 32], strides = [1, 1]} : vector<8x160xf32> to vector<1x32xf32>
    %10 = vector.extract_strided_slice %5 {offsets = [1, 32], sizes = [1, 32], strides = [1, 1]} : vector<8x160xf32> to vector<1x32xf32>
    %11 = vector.extract_strided_slice %5 {offsets = [1, 64], sizes = [1, 32], strides = [1, 1]} : vector<8x160xf32> to vector<1x32xf32>
    %12 = vector.extract_strided_slice %5 {offsets = [1, 96], sizes = [1, 32], strides = [1, 1]} : vector<8x160xf32> to vector<1x32xf32>
    %13 = vector.extract_strided_slice %5 {offsets = [1, 128], sizes = [1, 32], strides = [1, 1]} : vector<8x160xf32> to vector<1x32xf32>
    %c0_3 = arith.constant 0 : index
    %c0_4 = arith.constant 0 : index
    %c0_5 = arith.constant 0 : index
    %14 = vector.load %arg1[%c0_3, %c0_4, %c0_5] : memref<2x8x32xf32, #tpu.memory_space<vmem>>, vector<2x8x32xf32>
    %15 = vector.shape_cast %14 : vector<2x8x32xf32> to vector<16x32xf32>
    %16 = arith.truncf %15 : vector<16x32xf32> to vector<16x32xbf16>
    %cst = arith.constant dense<0.000000e+00> : vector<16x96xf32>
    %17 = tpu.matmul %16, %1, %cst {dimension_numbers = #tpu.dot_dimension_numbers<[1], [0], [0], [1], [0, 0, 1, 1], [], []>} : vector<16x32xbf16>, vector<32x96xbf16>, vector<16x96xf32> -> vector<16x96xf32>
    %18 = vector.broadcast %6 : vector<1x96xf32> to vector<16x96xf32>
    %19 = arith.addf %17, %18 : vector<16x96xf32>
    %20 = vector.extract_strided_slice %19 {offsets = [0, 0], sizes = [16, 32], strides = [1, 1]} : vector<16x96xf32> to vector<16x32xf32>
    %21 = vector.shape_cast %20 : vector<16x32xf32> to vector<2x8x32xf32>
    %22 = vector.extract_strided_slice %19 {offsets = [0, 32], sizes = [16, 32], strides = [1, 1]} : vector<16x96xf32> to vector<16x32xf32>
    %23 = vector.shape_cast %22 : vector<16x32xf32> to vector<2x8x32xf32>
    %24 = vector.extract_strided_slice %19 {offsets = [0, 64], sizes = [16, 32], strides = [1, 1]} : vector<16x96xf32> to vector<16x32xf32>
    %25 = vector.shape_cast %24 : vector<16x32xf32> to vector<2x8x32xf32>
    %26 = vector.shape_cast %21 : vector<2x8x32xf32> to vector<2x1x8x32xf32>
    %27 = vector.shape_cast %23 : vector<2x8x32xf32> to vector<1x2x8x32xf32>
    %28 = vector.broadcast %26 : vector<2x1x8x32xf32> to vector<2x2x8x32xf32>
    %29 = vector.broadcast %27 : vector<1x2x8x32xf32> to vector<2x2x8x32xf32>
    %30 = arith.mulf %28, %29 : vector<2x2x8x32xf32>
    %31 = vector.shape_cast %30 : vector<2x2x8x32xf32> to vector<32x32xf32>
    %32 = arith.truncf %31 : vector<32x32xf32> to vector<32x32xbf16>
    %cst_6 = arith.constant dense<0.000000e+00> : vector<32x32xf32>
    %33 = tpu.matmul %32, %4, %cst_6 {dimension_numbers = #tpu.dot_dimension_numbers<[1], [0], [0], [1], [0, 0, 1, 1], [], []>} : vector<32x32xbf16>, vector<32x32xbf16>, vector<32x32xf32> -> vector<32x32xf32>
    %34 = vector.shape_cast %33 : vector<32x32xf32> to vector<2x2x8x32xf32>
    %cst_7 = arith.constant dense<0xFF800000> : vector<2x8x32xf32>
    %35 = vector.multi_reduction <maximumf>, %34, %cst_7 [1] : vector<2x2x8x32xf32> to vector<2x8x32xf32>
    %36 = vector.shape_cast %35 : vector<2x8x32xf32> to vector<2x1x8x32xf32>
    %37 = vector.broadcast %36 : vector<2x1x8x32xf32> to vector<2x2x8x32xf32>
    %38 = arith.subf %34, %37 : vector<2x2x8x32xf32>
    %39 = math.exp %38 : vector<2x2x8x32xf32>
    %cst_8 = arith.constant dense<0.000000e+00> : vector<2x8x32xf32>
    %40 = vector.multi_reduction <add>, %39, %cst_8 [1] : vector<2x2x8x32xf32> to vector<2x8x32xf32>
    %41 = vector.shape_cast %40 : vector<2x8x32xf32> to vector<2x1x8x32xf32>
    %42 = tpu.reciprocal %41 {approx = true} : vector<2x1x8x32xf32> -> vector<2x1x8x32xf32>
    %43 = vector.broadcast %42 : vector<2x1x8x32xf32> to vector<2x2x8x32xf32>
    %44 = arith.mulf %39, %43 : vector<2x2x8x32xf32>
    %45 = vector.shape_cast %25 : vector<2x8x32xf32> to vector<1x2x8x32xf32>
    %46 = vector.broadcast %45 : vector<1x2x8x32xf32> to vector<2x2x8x32xf32>
    %47 = arith.mulf %44, %46 : vector<2x2x8x32xf32>
    %cst_9 = arith.constant dense<0.000000e+00> : vector<2x8x32xf32>
    %48 = vector.multi_reduction <add>, %47, %cst_9 [1] : vector<2x2x8x32xf32> to vector<2x8x32xf32>
    %49 = vector.shape_cast %48 : vector<2x8x32xf32> to vector<16x32xf32>
    %50 = arith.truncf %49 : vector<16x32xf32> to vector<16x32xbf16>
    %cst_10 = arith.constant dense<0.000000e+00> : vector<16x32xf32>
    %51 = tpu.matmul %50, %2, %cst_10 {dimension_numbers = #tpu.dot_dimension_numbers<[1], [0], [0], [1], [0, 0, 1, 1], [], []>} : vector<16x32xbf16>, vector<32x32xbf16>, vector<16x32xf32> -> vector<16x32xf32>
    %52 = vector.broadcast %7 : vector<1x32xf32> to vector<16x32xf32>
    %53 = arith.addf %51, %52 : vector<16x32xf32>
    %54 = arith.addf %15, %53 : vector<16x32xf32>
    %cst_11 = arith.constant dense<0.000000e+00> : vector<16xf32>
    %55 = vector.multi_reduction <add>, %54, %cst_11 [1] : vector<16x32xf32> to vector<16xf32>
    %56 = vector.shape_cast %55 : vector<16xf32> to vector<16x1xf32>
    %cst_12 = arith.constant 3.200000e+01 : f32
    %57 = vector.broadcast %cst_12 : f32 to vector<16x1xf32>
    %58 = arith.divf %56, %57 : vector<16x1xf32>
    %59 = vector.broadcast %58 : vector<16x1xf32> to vector<16x32xf32>
    %60 = arith.subf %54, %59 : vector<16x32xf32>
    %61 = arith.mulf %60, %60 : vector<16x32xf32>
    %cst_13 = arith.constant dense<0.000000e+00> : vector<16xf32>
    %62 = vector.multi_reduction <add>, %61, %cst_13 [1] : vector<16x32xf32> to vector<16xf32>
    %63 = vector.shape_cast %62 : vector<16xf32> to vector<16x1xf32>
    %cst_14 = arith.constant 3.200000e+01 : f32
    %64 = vector.broadcast %cst_14 : f32 to vector<16x1xf32>
    %65 = arith.divf %63, %64 : vector<16x1xf32>
    %66 = vector.broadcast %58 : vector<16x1xf32> to vector<16x32xf32>
    %67 = arith.subf %54, %66 : vector<16x32xf32>
    %cst_15 = arith.constant 9.99999974E-6 : f32
    %68 = vector.broadcast %cst_15 : f32 to vector<16x1xf32>
    %69 = arith.addf %65, %68 : vector<16x1xf32>
    %70 = math.rsqrt %69 : vector<16x1xf32>
    %71 = vector.broadcast %70 : vector<16x1xf32> to vector<16x32xf32>
    %72 = arith.mulf %67, %71 : vector<16x32xf32>
    %73 = vector.broadcast %9 : vector<1x32xf32> to vector<16x32xf32>
    %74 = arith.mulf %72, %73 : vector<16x32xf32>
    %75 = vector.broadcast %10 : vector<1x32xf32> to vector<16x32xf32>
    %76 = arith.addf %74, %75 : vector<16x32xf32>
    %77 = arith.truncf %76 : vector<16x32xf32> to vector<16x32xbf16>
    %c0_16 = arith.constant 0 : index
    %c0_17 = arith.constant 0 : index
    %78 = vector.load %arg4[%c0_16, %c0_17] : memref<32x2048xbf16, #tpu.memory_space<vmem>>, vector<32x2048xbf16>
    %cst_18 = arith.constant dense<0.000000e+00> : vector<16x2048xf32>
    %79 = tpu.matmul %77, %78, %cst_18 {dimension_numbers = #tpu.dot_dimension_numbers<[1], [0], [0], [1], [0, 0, 1, 1], [], []>} : vector<16x32xbf16>, vector<32x2048xbf16>, vector<16x2048xf32> -> vector<16x2048xf32>
    %c0_19 = arith.constant 0 : index
    %c0_20 = arith.constant 0 : index
    %80 = vector.load %arg5[%c0_19, %c0_20] : memref<1x2048xf32, #tpu.memory_space<vmem>>, vector<1x2048xf32>
    %81 = vector.broadcast %80 : vector<1x2048xf32> to vector<16x2048xf32>
    %82 = arith.addf %79, %81 : vector<16x2048xf32>
    %cst_21 = arith.constant 0.000000e+00 : f32
    %83 = vector.broadcast %cst_21 : f32 to vector<16x2048xf32>
    %84 = arith.maximumf %82, %83 : vector<16x2048xf32>
    %85 = arith.truncf %84 : vector<16x2048xf32> to vector<16x2048xbf16>
    %c0_22 = arith.constant 0 : index
    %c0_23 = arith.constant 0 : index
    %86 = vector.load %arg6[%c0_22, %c0_23] : memref<2048x32xbf16, #tpu.memory_space<vmem>>, vector<2048x32xbf16>
    %cst_24 = arith.constant dense<0.000000e+00> : vector<16x32xf32>
    %87 = tpu.matmul %85, %86, %cst_24 {dimension_numbers = #tpu.dot_dimension_numbers<[1], [0], [0], [1], [0, 0, 1, 1], [], []>} : vector<16x2048xbf16>, vector<2048x32xbf16>, vector<16x32xf32> -> vector<16x32xf32>
    %88 = vector.broadcast %13 : vector<1x32xf32> to vector<16x32xf32>
    %89 = arith.addf %87, %88 : vector<16x32xf32>
    %90 = arith.addf %76, %89 : vector<16x32xf32>
    %cst_25 = arith.constant dense<0.000000e+00> : vector<16xf32>
    %91 = vector.multi_reduction <add>, %90, %cst_25 [1] : vector<16x32xf32> to vector<16xf32>
    %92 = vector.shape_cast %91 : vector<16xf32> to vector<16x1xf32>
    %cst_26 = arith.constant 3.200000e+01 : f32
    %93 = vector.broadcast %cst_26 : f32 to vector<16x1xf32>
    %94 = arith.divf %92, %93 : vector<16x1xf32>
    %95 = vector.broadcast %94 : vector<16x1xf32> to vector<16x32xf32>
    %96 = arith.subf %90, %95 : vector<16x32xf32>
    %97 = arith.mulf %96, %96 : vector<16x32xf32>
    %cst_27 = arith.constant dense<0.000000e+00> : vector<16xf32>
    %98 = vector.multi_reduction <add>, %97, %cst_27 [1] : vector<16x32xf32> to vector<16xf32>
    %99 = vector.shape_cast %98 : vector<16xf32> to vector<16x1xf32>
    %cst_28 = arith.constant 3.200000e+01 : f32
    %100 = vector.broadcast %cst_28 : f32 to vector<16x1xf32>
    %101 = arith.divf %99, %100 : vector<16x1xf32>
    %102 = vector.broadcast %94 : vector<16x1xf32> to vector<16x32xf32>
    %103 = arith.subf %90, %102 : vector<16x32xf32>
    %cst_29 = arith.constant 9.99999974E-6 : f32
    %104 = vector.broadcast %cst_29 : f32 to vector<16x1xf32>
    %105 = arith.addf %101, %104 : vector<16x1xf32>
    %106 = math.rsqrt %105 : vector<16x1xf32>
    %107 = vector.broadcast %106 : vector<16x1xf32> to vector<16x32xf32>
    %108 = arith.mulf %103, %107 : vector<16x32xf32>
    %109 = vector.broadcast %11 : vector<1x32xf32> to vector<16x32xf32>
    %110 = arith.mulf %108, %109 : vector<16x32xf32>
    %111 = vector.broadcast %12 : vector<1x32xf32> to vector<16x32xf32>
    %112 = arith.addf %110, %111 : vector<16x32xf32>
    %113 = arith.truncf %112 : vector<16x32xf32> to vector<16x32xbf16>
    %cst_30 = arith.constant dense<0.000000e+00> : vector<16x8xf32>
    %114 = tpu.matmul %113, %3, %cst_30 {dimension_numbers = #tpu.dot_dimension_numbers<[1], [0], [0], [1], [0, 0, 1, 1], [], []>} : vector<16x32xbf16>, vector<32x8xbf16>, vector<16x8xf32> -> vector<16x8xf32>
    %115 = vector.broadcast %8 : vector<1x8xf32> to vector<16x8xf32>
    %116 = arith.addf %114, %115 : vector<16x8xf32>
    %117 = vector.shape_cast %116 : vector<16x8xf32> to vector<2x8x8xf32>
    %c0_31 = arith.constant 0 : index
    %c0_32 = arith.constant 0 : index
    %c0_33 = arith.constant 0 : index
    %118 = vector.load %arg7[%c0_31, %c0_32, %c0_33] : memref<2x8x8xf32, #tpu.memory_space<vmem>>, vector<2x8x8xf32>
    tpu.vector_store %arg7[%c0_31, %c0_32, %c0_33], %117 {strides = array<i32>} : memref<2x8x8xf32, #tpu.memory_space<vmem>>, vector<2x8x8xf32>,
    return
  }
  func.func @transform_0(%arg0: i32) -> (i32, i32, i32) {
    %c0_i32 = arith.constant 0 : i32
    %c0_i32_0 = arith.constant 0 : i32
    %c0_i32_1 = arith.constant 0 : i32
    return %c0_i32, %arg0, %c0_i32_0 : i32, i32, i32
  }
  func.func @transform_1(%arg0: i32) -> (i32, i32) {
    %c0_i32 = arith.constant 0 : i32
    %c0_i32_0 = arith.constant 0 : i32
    %c0_i32_1 = arith.constant 0 : i32
    return %c0_i32, %c0_i32_0 : i32, i32
  }
  func.func @transform_2(%arg0: i32) -> (i32, i32) {
    %c0_i32 = arith.constant 0 : i32
    %c0_i32_0 = arith.constant 0 : i32
    %c0_i32_1 = arith.constant 0 : i32
    return %c0_i32, %c0_i32_0 : i32, i32
  }
  func.func @transform_3(%arg0: i32) -> (i32, i32) {
    %c0_i32 = arith.constant 0 : i32
    %c0_i32_0 = arith.constant 0 : i32
    %c0_i32_1 = arith.constant 0 : i32
    return %c0_i32, %c0_i32_0 : i32, i32
  }
  func.func @transform_4(%arg0: i32) -> (i32, i32) {
    %c0_i32 = arith.constant 0 : i32
    %c0_i32_0 = arith.constant 0 : i32
    %c0_i32_1 = arith.constant 0 : i32
    return %c0_i32, %c0_i32_0 : i32, i32
  }
  func.func @transform_5(%arg0: i32) -> (i32, i32) {
    %c0_i32 = arith.constant 0 : i32
    %c0_i32_0 = arith.constant 0 : i32
    %c0_i32_1 = arith.constant 0 : i32
    return %c0_i32, %c0_i32_0 : i32, i32
  }
  func.func @transform_6(%arg0: i32) -> (i32, i32, i32) {
    %c0_i32 = arith.constant 0 : i32
    %c0_i32_0 = arith.constant 0 : i32
    %c0_i32_1 = arith.constant 0 : i32
    return %c0_i32, %arg0, %c0_i32_0 : i32, i32, i32
  }
}

</mosaic_0001>

<llo_original>
// kernel: tpu_custom_call.1
$region0: #{tpu_custom_call.1}
  #allocation0 [shape = 'u32[]', space=smem, size = 0x4, offset = 0x4, fixed_abs, tag = 'smem constant byte address 0x4 - core index']
  #allocation1 [shape = 'u32[144,128]{1,0:T(1,128)}', space=vmem, size = 0x12000, scoped, tag = 'internal scratch']
  %s0 = inlined_call_operand.hbm [shape: f32[2,8,32], index: 0, kind: input, shape index: {}]
  %s1 = inlined_call_operand.hbm [shape: bf16[32,168], index: 1, kind: input, shape index: {}]
  %s2 = inlined_call_operand.hbm [shape: f32[8,160], index: 2, kind: input, shape index: {}]
  %s3 = inlined_call_operand.hbm [shape: bf16[32,2048], index: 3, kind: input, shape index: {}]
  %s4 = inlined_call_operand.hbm [shape: f32[1,2048], index: 4, kind: input, shape index: {}]
  %s5 = inlined_call_operand.hbm [shape: bf16[2048,32], index: 5, kind: input, shape index: {}]
  %s6 = inlined_call_operand.hbm [shape: f32[2,8,8], index: 6, kind: output, shape index: {}]
  %s7 = sld [smem:[#allocation0]]
  $region58: #{tpu_custom_call.1} parent=0
    _
  %s9 = ssub.s32 1, %s7
  %s10 = scalar_select 0, %s9, %s7
  $region1: #{tpu_custom_call.1} parent=0
    #allocation2 [shape = 'u8[8192]{0}', space=vmem, size = 0x2000, scoped, tag = 'input window, operand 0, single buffered']
    #allocation3 [shape = 's32[1]{0}', space=sflag, size = 0x4, scoped, tag = 'scoped memory for tpu_custom_call.1']
    #allocation4 [shape = 's32[1]{0}', space=sflag, size = 0x4, scoped, tag = 'scoped memory for tpu_custom_call.1']
    #allocation5 [shape = 'u8[16384]{0}', space=vmem, size = 0x4000, scoped, tag = 'input window, operand 1, single buffered']
    #allocation6 [shape = 's32[1]{0}', space=sflag, size = 0x4, scoped, tag = 'scoped memory for tpu_custom_call.1']
    #allocation7 [shape = 'u8[8192]{0}', space=vmem, size = 0x2000, scoped, tag = 'input window, operand 2, single buffered']
    #allocation8 [shape = 'u8[131072]{0}', space=vmem, size = 0x20000, scoped, tag = 'input window, operand 3, single buffered']
    #allocation9 [shape = 's32[1]{0}', space=sflag, size = 0x4, scoped, tag = 'scoped memory for tpu_custom_call.1']
    #allocation10 [shape = 'u8[8192]{0}', space=vmem, size = 0x2000, scoped, tag = 'input window, operand 4, single buffered']
    #allocation11 [shape = 'u8[524288]{0}', space=vmem, size = 0x80000, scoped, tag = 'input window, operand 5, single buffered']
    #allocation12 [shape = 's32[1]{0}', space=sflag, size = 0x4, scoped, tag = 'scoped memory for tpu_custom_call.1']
    #allocation13 [shape = 'u8[8192]{0}', space=vmem, size = 0x2000, scoped, tag = 'output window, operand 0, single buffered']
    %11 = vsyncpa [#allocation3], 0
    %12 = vsyncpa [#allocation6], 0
    %13 = vsyncpa [#allocation9], 0
    %14 = vsyncpa [#allocation12], 0
    %15 = vsyncpa [#allocation4], 0
    // Predicated region
    $region2: #{tpu_custom_call.1} parent=1 // pred_check
      _
    $region3: #{tpu_custom_call.1} parent=1 // pred_check_branch
      %17 = sbr.rel (0) target = $region5
    $region4: #{tpu_custom_call.1} parent=1 // pred_region
      %s19 = ssub.s32 256, 256
      %20 = vsyncadd [#allocation3], %s19
      %s21 = sshll.u32 [#allocation2], 4
      %s22 = int_to_ptr.vmem [resolvable:$true] %s21
      %27 = dma.hbm_to_vmem [thread:$0]  %s0, 256, %s22, [#allocation3], 128, 128, 8
    $region5: #{tpu_custom_call.1} parent=1 // pred_fallthru
      _
    // Predicated region
    $region6: #{tpu_custom_call.1} parent=1 // pred_check
      _
    $region7: #{tpu_custom_call.1} parent=1 // pred_check_branch
      %29 = sbr.rel (0) target = $region9
    $region8: #{tpu_custom_call.1} parent=1 // pred_region
      %s31 = ssub.s32 512, 512
      %32 = vsyncadd [#allocation6], %s31
      %s33 = sshll.u32 [#allocation5], 4
      %s34 = int_to_ptr.vmem [resolvable:$true] %s33
      %39 = dma.hbm_to_vmem [thread:$0]  %s1, 512, %s34, [#allocation6], 128, 128, 8
    $region9: #{tpu_custom_call.1} parent=1 // pred_fallthru
      _
    // Predicated region
    $region10: #{tpu_custom_call.1} parent=1 // pred_check
      _
    $region11: #{tpu_custom_call.1} parent=1 // pred_check_branch
      %41 = sbr.rel (0) target = $region13
    $region12: #{tpu_custom_call.1} parent=1 // pred_region
      %s43 = ssub.s32 256, 256
      %44 = vsyncadd [#allocation6], %s43
      %s46 = sshll.u32 [#allocation7], 4
      %s47 = int_to_ptr.vmem [resolvable:$true] %s46
      %49 = dma.hbm_to_vmem [thread:$0]  %s2, 256, %s47, [#allocation6]
    $region13: #{tpu_custom_call.1} parent=1 // pred_fallthru
      _
    // Predicated region
    $region14: #{tpu_custom_call.1} parent=1 // pred_check
      _
    $region15: #{tpu_custom_call.1} parent=1 // pred_check_branch
      %51 = sbr.rel (0) target = $region17
    $region16: #{tpu_custom_call.1} parent=1 // pred_region
      %s53 = ssub.s32 4096, 4096
      %54 = vsyncadd [#allocation9], %s53
      %s55 = sshll.u32 [#allocation8], 4
      %s56 = int_to_ptr.vmem [resolvable:$true] %s55
      %61 = dma.hbm_to_vmem [thread:$0]  %s3, 4096, %s56, [#allocation9], 1024, 1024, 64
    $region17: #{tpu_custom_call.1} parent=1 // pred_fallthru
      _
    // Predicated region
    $region18: #{tpu_custom_call.1} parent=1 // pred_check
      _
    $region19: #{tpu_custom_call.1} parent=1 // pred_check_branch
      %63 = sbr.rel (0) target = $region21
    $region20: #{tpu_custom_call.1} parent=1 // pred_region
      %s65 = ssub.s32 256, 256
      %66 = vsyncadd [#allocation9], %s65
      %s68 = sshll.u32 [#allocation10], 4
      %s69 = int_to_ptr.vmem [resolvable:$true] %s68
      %71 = dma.hbm_to_vmem [thread:$0]  %s4, 256, %s69, [#allocation9]
    $region21: #{tpu_custom_call.1} parent=1 // pred_fallthru
      _
    // Predicated region
    $region22: #{tpu_custom_call.1} parent=1 // pred_check
      _
    $region23: #{tpu_custom_call.1} parent=1 // pred_check_branch
      %73 = sbr.rel (0) target = $region25
    $region24: #{tpu_custom_call.1} parent=1 // pred_region
      %s75 = ssub.s32 16384, 16384
      %76 = vsyncadd [#allocation12], %s75
      %s77 = sshll.u32 [#allocation11], 4
      %s78 = int_to_ptr.vmem [resolvable:$true] %s77
      %83 = dma.hbm_to_vmem [thread:$0]  %s5, 16384, %s78, [#allocation12], 64, 64, 4
    $region25: #{tpu_custom_call.1} parent=1 // pred_fallthru
      _
    // Predicated region
    $region26: #{tpu_custom_call.1} parent=1 // pred_check
      _
    $region27: #{tpu_custom_call.1} parent=1 // pred_check_branch
      %85 = sbr.rel (0) target = $region29
    $region28: #{tpu_custom_call.1} parent=1 // pred_region
      %86 = dma.done [#allocation3], 256
    $region29: #{tpu_custom_call.1} parent=1 // pred_fallthru
      _
    // Predicated region
    $region30: #{tpu_custom_call.1} parent=1 // pred_check
      _
    $region31: #{tpu_custom_call.1} parent=1 // pred_check_branch
      %88 = sbr.rel (0) target = $region33
    $region32: #{tpu_custom_call.1} parent=1 // pred_region
      %89 = dma.done [#allocation6], 512
    $region33: #{tpu_custom_call.1} parent=1 // pred_fallthru
      _
    // Predicated region
    $region34: #{tpu_custom_call.1} parent=1 // pred_check
      _
    $region35: #{tpu_custom_call.1} parent=1 // pred_check_branch
      %91 = sbr.rel (0) target = $region37
    $region36: #{tpu_custom_call.1} parent=1 // pred_region
      %92 = dma.done [#allocation6], 256
    $region37: #{tpu_custom_call.1} parent=1 // pred_fallthru
      _
    // Predicated region
    $region38: #{tpu_custom_call.1} parent=1 // pred_check
      _
    $region39: #{tpu_custom_call.1} parent=1 // pred_check_branch
      %94 = sbr.rel (0) target = $region41
    $region40: #{tpu_custom_call.1} parent=1 // pred_region
      %95 = dma.done [#allocation9], 4096
    $region41: #{tpu_custom_call.1} parent=1 // pred_fallthru
      _
    // Predicated region
    $region42: #{tpu_custom_call.1} parent=1 // pred_check
      _
    $region43: #{tpu_custom_call.1} parent=1 // pred_check_branch
      %97 = sbr.rel (0) target = $region45
    $region44: #{tpu_custom_call.1} parent=1 // pred_region
      %98 = dma.done [#allocation9], 256
    $region45: #{tpu_custom_call.1} parent=1 // pred_fallthru
      _
    // Predicated region
    $region46: #{tpu_custom_call.1} parent=1 // pred_check
      _
    $region47: #{tpu_custom_call.1} parent=1 // pred_check_branch
      %100 = sbr.rel (0) target = $region49
    $region48: #{tpu_custom_call.1} parent=1 // pred_region
      %101 = dma.done [#allocation12], 16384
    $region49: #{tpu_custom_call.1} parent=1 // pred_fallthru
      _
    %v103 = vld [vmem:[#allocation5] sm:$0xff]
    %v104 = vld [vmem:[#allocation5 + $0x8] sm:$0xff]
    %v105 = vld [vmem:[#allocation5 + $0x10] sm:$0xff]
    %v106 = vld [vmem:[#allocation5 + $0x18] sm:$0xff]
    %v107 = vld [vmem:[#allocation7] sm:$0xff]
    %v108 = vld [vmem:[#allocation7 + $0x8] sm:$0xff]
    %v109 = vld [vmem:[#allocation2] sm:$0xff]
    %v110 = vld [vmem:[#allocation2 + $0x8] sm:$0xff]
    %v111 = vpack.c.bf16 %v110, %v109
    %v112 = vlaneseq
    %v113 = vshrl.u32 %v112, 7
    %v114 = vsub.s32 0, %v113
    %v115 = vrot.slane %v107, %v114
    %v120 = vunpack.c.l.b16 %v103
    %v121 = vunpack.c.l.b16 %v104
    %v122 = vunpack.c.l.b16 %v105
    %v123 = vunpack.c.l.b16 %v106
    %v124 = vpack.c.b16 %v121, %v120
    %v125 = vpack.c.b16 %v123, %v122
    %vm128 = vcmask 261120
    %v130 = vsel %vm128, %v111, 0
    %132 = vmatprep.subr.bf16.mxu0 0
    %133 = vmatpush1.bf16.msra.mxu0 %v124
    %134 = vmatprep.subr.bf16.mxu0 0
    %135 = vmatpush1.bf16.msra.mxu0 %v125
    %136 = vmatprep.subr.bf16.mxu0 0
    %137 = vmatpush1.bf16.msra.mxu0 0
    %138 = vmatprep.subr.bf16.mxu0 0
    %139 = vmatpush1.bf16.msra.mxu0 0
    %140 = vmatprep.subr.bf16.mxu0 0
    %141 = vmatpush1.bf16.msra.mxu0 0
    %142 = vmatprep.subr.bf16.mxu0 0
    %143 = vmatpush1.bf16.msra.mxu0 0
    %144 = vmatprep.subr.bf16.mxu0 0
    %145 = vmatpush1.bf16.msra.mxu0 0
    %146 = vmatprep.subr.bf16.mxu0 0
    %147 = vmatpush1.bf16.msra.mxu0 0
    %148 = vmatprep.subr.bf16.mxu0 0
    %149 = vmatpush1.bf16.msra.mxu0 0
    %150 = vmatprep.subr.bf16.mxu0 0
    %151 = vmatpush1.bf16.msra.mxu0 0
    %152 = vmatprep.subr.bf16.mxu0 0
    %153 = vmatpush1.bf16.msra.mxu0 0
    %154 = vmatprep.subr.bf16.mxu0 0
    %155 = vmatpush1.bf16.msra.mxu0 0
    %156 = vmatprep.subr.bf16.mxu0 0
    %157 = vmatpush1.bf16.msra.mxu0 0
    %158 = vmatprep.subr.bf16.mxu0 0
    %159 = vmatpush1.bf16.msra.mxu0 0
    %160 = vmatprep.subr.bf16.mxu0 0
    %161 = vmatpush1.bf16.msra.mxu0 0
    %162 = vmatprep.subr.bf16.mxu0 0
    %163 = vmatpush1.bf16.msra.mxu0 0
    %164 = vmatprep.mubr.bf16.mxu0 0
    %165 = vmatmul.mubr.bf16.gmra.mrb[0].mxu0 %v130
    %v166 = vpop.f32.mrb[0].mxu0
    %v167 = vadd.f32 %v115, %v166
    %v168 = vpop.f32.mrb[0].mxu0
    %v169 = vpop.f32.mrb[0].mxu0
    %v170 = vadd.f32 %v115, %v169
    %v171 = vpop.f32.mrb[0].mxu0
    %172 = vdwg.mxu0
    %175 = vrot.lane.b32.xlu0 %v167, 96
    %v176 = vpop.permute.xlu0 %175
    %177 = vrot.lane.b32.xlu0 %v170, 96
    %v178 = vpop.permute.xlu0 %177
    %v181 = vmul.f32 %v167, %v176
    %v182 = vmul.f32 %v167, %v178
    %v183 = vmul.f32 %v170, %v176
    %v184 = vmul.f32 %v170, %v178
    %v185 = vpack.c.bf16 %v182, %v181
    %v186 = vpack.c.bf16 %v184, %v183
    %v187 = vunpack.c.h.b16 %v103
    %v188 = vunpack.c.h.b16 %v104
    %v189 = vunpack.c.h.b16 %v105
    %v190 = vunpack.c.h.b16 %v106
    %v191 = vpack.c.b16 %v188, %v187
    %v192 = vpack.c.b16 %v190, %v189
    %193 = vrot.lane.b32.xlu0 %v191, 120
    %v194 = vpop.permute.xlu0 %193
    %195 = vrot.lane.b32.xlu0 %v192, 120
    %v196 = vpop.permute.xlu0 %195
    %v200 = vsel %vm128, %v185, 0
    %v203 = vsel %vm128, %v186, 0
    %205 = vmatprep.subr.bf16.mxu0 0
    %206 = vmatpush1.bf16.msra.mxu0 %v194
    %207 = vmatprep.subr.bf16.mxu0 0
    %208 = vmatpush1.bf16.msra.mxu0 %v196
    %209 = vmatprep.subr.bf16.mxu0 0
    %210 = vmatpush1.bf16.msra.mxu0 0
    %211 = vmatprep.subr.bf16.mxu0 0
    %212 = vmatpush1.bf16.msra.mxu0 0
    %213 = vmatprep.subr.bf16.mxu0 0
    %214 = vmatpush1.bf16.msra.mxu0 0
    %215 = vmatprep.subr.bf16.mxu0 0
    %216 = vmatpush1.bf16.msra.mxu0 0
    %217 = vmatprep.subr.bf16.mxu0 0
    %218 = vmatpush1.bf16.msra.mxu0 0
    %219 = vmatprep.subr.bf16.mxu0 0
    %220 = vmatpush1.bf16.msra.mxu0 0
    %221 = vmatprep.subr.bf16.mxu0 0
    %222 = vmatpush1.bf16.msra.mxu0 0
    %223 = vmatprep.subr.bf16.mxu0 0
    %224 = vmatpush1.bf16.msra.mxu0 0
    %225 = vmatprep.subr.bf16.mxu0 0
    %226 = vmatpush1.bf16.msra.mxu0 0
    %227 = vmatprep.subr.bf16.mxu0 0
    %228 = vmatpush1.bf16.msra.mxu0 0
    %229 = vmatprep.subr.bf16.mxu0 0
    %230 = vmatpush1.bf16.msra.mxu0 0
    %231 = vmatprep.subr.bf16.mxu0 0
    %232 = vmatpush1.bf16.msra.mxu0 0
    %233 = vmatprep.subr.bf16.mxu0 0
    %234 = vmatpush1.bf16.msra.mxu0 0
    %235 = vmatprep.subr.bf16.mxu0 0
    %236 = vmatpush1.bf16.msra.mxu0 0
    %237 = vmatprep.mubr.bf16.mxu0 0
    %238 = vmatmul.mubr.bf16.gmra.mrb[0].mxu0 %v200
    %v239 = vpop.f32.mrb[0].mxu0
    %v240 = vadd.f32 0.0, %v239
    %v241 = vpop.f32.mrb[0].mxu0
    %v242 = vpop.f32.mrb[0].mxu0
    %v243 = vadd.f32 0.0, %v242
    %v244 = vpop.f32.mrb[0].mxu0
    %245 = vmatprep.mubr.bf16.mxu0 0
    %246 = vmatmul.mubr.bf16.gmra.mrb[0].mxu0 %v203
    %v247 = vpop.f32.mrb[0].mxu0
    %v248 = vadd.f32 0.0, %v247
    %v249 = vpop.f32.mrb[0].mxu0
    %v250 = vpop.f32.mrb[0].mxu0
    %v251 = vadd.f32 0.0, %v250
    %v252 = vpop.f32.mrb[0].mxu0
    %253 = vdwg.mxu0
    %v254 = vsel %vm128, %v240, -inf
    %v255 = vsel %vm128, %v243, -inf
    %v256 = vmax.f32 %v254, %v255
    %v257 = vsel %vm128, %v248, -inf
    %v258 = vsel %vm128, %v251, -inf
    %v259 = vmax.f32 %v257, %v258
    %v260 = vsub.f32 %v240, %v256
    %v261 = vsub.f32 %v243, %v256
    %v262 = vsub.f32 %v248, %v259
    %v263 = vsub.f32 %v251, %v259
    %v264 = vmul.f32 %v260, 1.442695
    %v265 = vpow.pop %v264
    %v266 = vmul.f32 %v261, 1.442695
    %v267 = vpow.pop %v266
    %v268 = vmul.f32 %v262, 1.442695
    %v269 = vpow.pop %v268
    %v270 = vmul.f32 %v263, 1.442695
    %v271 = vpow.pop %v270
    %v272 = vsel %vm128, %v265, 0.0
    %v273 = vsel %vm128, %v267, 0.0
    %v274 = vadd.f32 %v272, %v273
    %v275 = vsel %vm128, %v269, 0.0
    %v276 = vsel %vm128, %v271, 0.0
    %v277 = vadd.f32 %v275, %v276
    %v278 = vrcp.pop %v274
    %v279 = vrcp.pop %v277
    %v280 = vmul.f32 %v265, %v278
    %v281 = vmul.f32 %v267, %v278
    %v282 = vmul.f32 %v269, %v279
    %v283 = vmul.f32 %v271, %v279
    %284 = vrot.lane.b32.xlu0 %v167, 64
    %v285 = vpop.permute.xlu0 %284
    %286 = vrot.lane.b32.xlu0 %v170, 64
    %v287 = vpop.permute.xlu0 %286
    %v290 = vmul.f32 %v280, %v285
    %v291 = vmul.f32 %v281, %v287
    %v292 = vmul.f32 %v282, %v285
    %v293 = vmul.f32 %v283, %v287
    %v294 = vsel %vm128, %v290, 0.0
    %v295 = vsel %vm128, %v291, 0.0
    %v296 = vadd.f32 %v294, %v295
    %v297 = vsel %vm128, %v292, 0.0
    %v298 = vsel %vm128, %v293, 0.0
    %v299 = vadd.f32 %v297, %v298
    %v300 = vpack.c.bf16 %v299, %v296
    %301 = vrot.lane.b32.xlu0 %v124, 32
    %v302 = vpop.permute.xlu0 %301
    %303 = vrot.lane.b32.xlu0 %v125, 32
    %v304 = vpop.permute.xlu0 %303
    %308 = vrot.lane.b32.xlu0 %v115, 32
    %v309 = vpop.permute.xlu0 %308
    %v312 = vsel %vm128, %v300, 0
    %314 = vmatprep.subr.bf16.mxu0 0
    %315 = vmatpush1.bf16.msra.mxu0 %v302
    %316 = vmatprep.subr.bf16.mxu0 0
    %317 = vmatpush1.bf16.msra.mxu0 %v304
    %318 = vmatprep.subr.bf16.mxu0 0
    %319 = vmatpush1.bf16.msra.mxu0 0
    %320 = vmatprep.subr.bf16.mxu0 0
    %321 = vmatpush1.bf16.msra.mxu0 0
    %322 = vmatprep.subr.bf16.mxu0 0
    %323 = vmatpush1.bf16.msra.mxu0 0
    %324 = vmatprep.subr.bf16.mxu0 0
    %325 = vmatpush1.bf16.msra.mxu0 0
    %326 = vmatprep.subr.bf16.mxu0 0
    %327 = vmatpush1.bf16.msra.mxu0 0
    %328 = vmatprep.subr.bf16.mxu0 0
    %329 = vmatpush1.bf16.msra.mxu0 0
    %330 = vmatprep.subr.bf16.mxu0 0
    %331 = vmatpush1.bf16.msra.mxu0 0
    %332 = vmatprep.subr.bf16.mxu0 0
    %333 = vmatpush1.bf16.msra.mxu0 0
    %334 = vmatprep.subr.bf16.mxu0 0
    %335 = vmatpush1.bf16.msra.mxu0 0
    %336 = vmatprep.subr.bf16.mxu0 0
    %337 = vmatpush1.bf16.msra.mxu0 0
    %338 = vmatprep.subr.bf16.mxu0 0
    %339 = vmatpush1.bf16.msra.mxu0 0
    %340 = vmatprep.subr.bf16.mxu0 0
    %341 = vmatpush1.bf16.msra.mxu0 0
    %342 = vmatprep.subr.bf16.mxu0 0
    %343 = vmatpush1.bf16.msra.mxu0 0
    %344 = vmatprep.subr.bf16.mxu0 0
    %345 = vmatpush1.bf16.msra.mxu0 0
    %346 = vmatprep.mubr.bf16.mxu0 0
    %347 = vmatmul.mubr.bf16.gmra.mrb[0].mxu0 %v312
    %v348 = vpop.f32.mrb[0].mxu0
    %v349 = vadd.f32 %v309, %v348
    %v350 = vpop.f32.mrb[0].mxu0
    %v351 = vpop.f32.mrb[0].mxu0
    %v352 = vadd.f32 %v309, %v351
    %v353 = vpop.f32.mrb[0].mxu0
    %354 = vdwg.mxu0
    %v355 = vadd.f32 %v109, %v349
    %v356 = vadd.f32 %v110, %v352
    %v357 = vsel %vm128, %v355, 0.0
    %358 = vadd.xlane.f32.xlu0 %v357
    %v359 = vpop.xlane.xlu0 %358
    %v360 = vsel %vm128, %v356, 0.0
    %361 = vadd.xlane.f32.xlu0 %v360
    %v362 = vpop.xlane.xlu0 %361
    %v363 = vrcp.pop 32.0
    %v364 = vmul.f32 %v359, %v363
    %v365 = vmul.f32 %v362, %v363
    %v366 = vsub.f32 %v355, %v364
    %v367 = vsub.f32 %v356, %v365
    %v368 = vmul.f32 %v366, %v366
    %v369 = vmul.f32 %v367, %v367
    %v370 = vsel %vm128, %v368, 0.0
    %371 = vadd.xlane.f32.xlu0 %v370
    %v372 = vpop.xlane.xlu0 %371
    %v373 = vsel %vm128, %v369, 0.0
    %374 = vadd.xlane.f32.xlu0 %v373
    %v375 = vpop.xlane.xlu0 %374
    %v376 = vmul.f32 %v372, %v363
    %v377 = vmul.f32 %v375, %v363
    %v378 = vadd.f32 %v376, 1e-05
    %v379 = vadd.f32 %v377, 1e-05
    %v380 = vrsqrt.pop %v378
    %v381 = vrsqrt.pop %v379
    %v382 = vmul.f32 %v366, %v380
    %v383 = vmul.f32 %v367, %v381
    %v384 = vlaneseq
    %v385 = vshrl.u32 %v384, 7
    %v386 = vsub.s32 1, %v385
    %v387 = vrot.slane %v107, %v386
    %v388 = vmul.f32 %v382, %v387
    %v389 = vmul.f32 %v383, %v387
    %391 = vrot.lane.b32.xlu0 %v387, 96
    %v392 = vpop.permute.xlu0 %391
    %v394 = vadd.f32 %v388, %v392
    %v395 = vadd.f32 %v389, %v392
    %v396 = vpack.c.bf16 %v395, %v394
    %v397 = vld [vmem:[#allocation8] sm:$0xff]
    %v398 = vld [vmem:[#allocation8 + $0x8] sm:$0xff]
    %v399 = vld [vmem:[#allocation8 + $0x10] sm:$0xff]
    %v400 = vld [vmem:[#allocation8 + $0x18] sm:$0xff]
    %v401 = vld [vmem:[#allocation8 + $0x20] sm:$0xff]
    %v402 = vld [vmem:[#allocation8 + $0x28] sm:$0xff]
    %v403 = vld [vmem:[#allocation8 + $0x30] sm:$0xff]
    %v404 = vld [vmem:[#allocation8 + $0x38] sm:$0xff]
    %v405 = vld [vmem:[#allocation8 + $0x40] sm:$0xff]
    %v406 = vld [vmem:[#allocation8 + $0x48] sm:$0xff]
    %v407 = vld [vmem:[#allocation8 + $0x50] sm:$0xff]
    %v408 = vld [vmem:[#allocation8 + $0x58] sm:$0xff]
    %v409 = vld [vmem:[#allocation8 + $0x60] sm:$0xff]
    %v410 = vld [vmem:[#allocation8 + $0x68] sm:$0xff]
    %v411 = vld [vmem:[#allocation8 + $0x70] sm:$0xff]
    %v412 = vld [vmem:[#allocation8 + $0x78] sm:$0xff]
    %v413 = vld [vmem:[#allocation8 + $0x80] sm:$0xff]
    %v414 = vld [vmem:[#allocation8 + $0x88] sm:$0xff]
    %v415 = vld [vmem:[#allocation8 + $0x90] sm:$0xff]
    %v416 = vld [vmem:[#allocation8 + $0x98] sm:$0xff]
    %v417 = vld [vmem:[#allocation8 + $0xa0] sm:$0xff]
    %v418 = vld [vmem:[#allocation8 + $0xa8] sm:$0xff]
    %v419 = vld [vmem:[#allocation8 + $0xb0] sm:$0xff]
    %v420 = vld [vmem:[#allocation8 + $0xb8] sm:$0xff]
    %v421 = vld [vmem:[#allocation8 + $0xc0] sm:$0xff]
    %v422 = vld [vmem:[#allocation8 + $0xc8] sm:$0xff]
    %v423 = vld [vmem:[#allocation8 + $0xd0] sm:$0xff]
    %v424 = vld [vmem:[#allocation8 + $0xd8] sm:$0xff]
    %v425 = vld [vmem:[#allocation8 + $0xe0] sm:$0xff]
    %v426 = vld [vmem:[#allocation8 + $0xe8] sm:$0xff]
    %v427 = vld [vmem:[#allocation8 + $0xf0] sm:$0xff]
    %v428 = vld [vmem:[#allocation8 + $0xf8] sm:$0xff]
    %v429 = vld [vmem:[#allocation10] sm:$0xff]
    %v430 = vld [vmem:[#allocation10 + $0x8] sm:$0xff]
    %v433 = vlaneseq
    %v434 = vshrl.u32 %v433, 7
    %v435 = vsub.s32 0, %v434
    %v436 = vrot.slane %v429, %v435
    %v437 = vlaneseq
    %v438 = vshrl.u32 %v437, 7
    %v439 = vsub.s32 1, %v438
    %v440 = vrot.slane %v429, %v439
    %v441 = vlaneseq
    %v442 = vshrl.u32 %v441, 7
    %v443 = vsub.s32 2, %v442
    %v444 = vrot.slane %v429, %v443
    %v445 = vlaneseq
    %v446 = vshrl.u32 %v445, 7
    %v447 = vsub.s32 3, %v446
    %v448 = vrot.slane %v429, %v447
    %v449 = vlaneseq
    %v450 = vshrl.u32 %v449, 7
    %v451 = vsub.s32 4, %v450
    %v452 = vrot.slane %v429, %v451
    %v453 = vlaneseq
    %v454 = vshrl.u32 %v453, 7
    %v455 = vsub.s32 5, %v454
    %v456 = vrot.slane %v429, %v455
    %v457 = vlaneseq
    %v458 = vshrl.u32 %v457, 7
    %v459 = vsub.s32 6, %v458
    %v460 = vrot.slane %v429, %v459
    %v461 = vlaneseq
    %v462 = vshrl.u32 %v461, 7
    %v463 = vsub.s32 7, %v462
    %v464 = vrot.slane %v429, %v463
    %v465 = vlaneseq
    %v466 = vshrl.u32 %v465, 7
    %v467 = vsub.s32 0, %v466
    %v468 = vrot.slane %v430, %v467
    %v469 = vlaneseq
    %v470 = vshrl.u32 %v469, 7
    %v471 = vsub.s32 1, %v470
    %v472 = vrot.slane %v430, %v471
    %v473 = vlaneseq
    %v474 = vshrl.u32 %v473, 7
    %v475 = vsub.s32 2, %v474
    %v476 = vrot.slane %v430, %v475
    %v477 = vlaneseq
    %v478 = vshrl.u32 %v477, 7
    %v479 = vsub.s32 3, %v478
    %v480 = vrot.slane %v430, %v479
    %v481 = vlaneseq
    %v482 = vshrl.u32 %v481, 7
    %v483 = vsub.s32 4, %v482
    %v484 = vrot.slane %v430, %v483
    %v485 = vlaneseq
    %v486 = vshrl.u32 %v485, 7
    %v487 = vsub.s32 5, %v486
    %v488 = vrot.slane %v430, %v487
    %v489 = vlaneseq
    %v490 = vshrl.u32 %v489, 7
    %v491 = vsub.s32 6, %v490
    %v492 = vrot.slane %v430, %v491
    %v493 = vlaneseq
    %v494 = vshrl.u32 %v493, 7
    %v495 = vsub.s32 7, %v494
    %v496 = vrot.slane %v430, %v495
    %v545 = vunpack.c.l.b16 %v397
    %v546 = vunpack.c.h.b16 %v397
    %v547 = vunpack.c.l.b16 %v398
    %v548 = vunpack.c.h.b16 %v398
    %v549 = vunpack.c.l.b16 %v399
    %v550 = vunpack.c.h.b16 %v399
    %v551 = vunpack.c.l.b16 %v400
    %v552 = vunpack.c.h.b16 %v400
    %v553 = vunpack.c.l.b16 %v401
    %v554 = vunpack.c.h.b16 %v401
    %v555 = vunpack.c.l.b16 %v402
    %v556 = vunpack.c.h.b16 %v402
    %v557 = vunpack.c.l.b16 %v403
    %v558 = vunpack.c.h.b16 %v403
    %v559 = vunpack.c.l.b16 %v404
    %v560 = vunpack.c.h.b16 %v404
    %v561 = vunpack.c.l.b16 %v405
    %v562 = vunpack.c.h.b16 %v405
    %v563 = vunpack.c.l.b16 %v406
    %v564 = vunpack.c.h.b16 %v406
    %v565 = vunpack.c.l.b16 %v407
    %v566 = vunpack.c.h.b16 %v407
    %v567 = vunpack.c.l.b16 %v408
    %v568 = vunpack.c.h.b16 %v408
    %v569 = vunpack.c.l.b16 %v409
    %v570 = vunpack.c.h.b16 %v409
    %v571 = vunpack.c.l.b16 %v410
    %v572 = vunpack.c.h.b16 %v410
    %v573 = vunpack.c.l.b16 %v411
    %v574 = vunpack.c.h.b16 %v411
    %v575 = vunpack.c.l.b16 %v412
    %v576 = vunpack.c.h.b16 %v412
    %v577 = vunpack.c.l.b16 %v413
    %v578 = vunpack.c.h.b16 %v413
    %v579 = vunpack.c.l.b16 %v414
    %v580 = vunpack.c.h.b16 %v414
    %v581 = vunpack.c.l.b16 %v415
    %v582 = vunpack.c.h.b16 %v415
    %v583 = vunpack.c.l.b16 %v416
    %v584 = vunpack.c.h.b16 %v416
    %v585 = vunpack.c.l.b16 %v417
    %v586 = vunpack.c.h.b16 %v417
    %v587 = vunpack.c.l.b16 %v418
    %v588 = vunpack.c.h.b16 %v418
    %v589 = vunpack.c.l.b16 %v419
    %v590 = vunpack.c.h.b16 %v419
    %v591 = vunpack.c.l.b16 %v420
    %v592 = vunpack.c.h.b16 %v420
    %v593 = vunpack.c.l.b16 %v421
    %v594 = vunpack.c.h.b16 %v421
    %v595 = vunpack.c.l.b16 %v422
    %v596 = vunpack.c.h.b16 %v422
    %v597 = vunpack.c.l.b16 %v423
    %v598 = vunpack.c.h.b16 %v423
    %v599 = vunpack.c.l.b16 %v424
    %v600 = vunpack.c.h.b16 %v424
    %v601 = vunpack.c.l.b16 %v425
    %v602 = vunpack.c.h.b16 %v425
    %v603 = vunpack.c.l.b16 %v426
    %v604 = vunpack.c.h.b16 %v426
    %v605 = vunpack.c.l.b16 %v427
    %v606 = vunpack.c.h.b16 %v427
    %v607 = vunpack.c.l.b16 %v428
    %v608 = vunpack.c.h.b16 %v428
    %v609 = vpack.c.b16 %v561, %v545
    %v610 = vpack.c.b16 %v562, %v546
    %v611 = vpack.c.b16 %v563, %v547
    %v612 = vpack.c.b16 %v564, %v548
    %v613 = vpack.c.b16 %v565, %v549
    %v614 = vpack.c.b16 %v566, %v550
    %v615 = vpack.c.b16 %v567, %v551
    %v616 = vpack.c.b16 %v568, %v552
    %v617 = vpack.c.b16 %v569, %v553
    %v618 = vpack.c.b16 %v570, %v554
    %v619 = vpack.c.b16 %v571, %v555
    %v620 = vpack.c.b16 %v572, %v556
    %v621 = vpack.c.b16 %v573, %v557
    %v622 = vpack.c.b16 %v574, %v558
    %v623 = vpack.c.b16 %v575, %v559
    %v624 = vpack.c.b16 %v576, %v560
    %v625 = vpack.c.b16 %v593, %v577
    %v626 = vpack.c.b16 %v594, %v578
    %v627 = vpack.c.b16 %v595, %v579
    %v628 = vpack.c.b16 %v596, %v580
    %v629 = vpack.c.b16 %v597, %v581
    %v630 = vpack.c.b16 %v598, %v582
    %v631 = vpack.c.b16 %v599, %v583
    %v632 = vpack.c.b16 %v600, %v584
    %v633 = vpack.c.b16 %v601, %v585
    %v634 = vpack.c.b16 %v602, %v586
    %v635 = vpack.c.b16 %v603, %v587
    %v636 = vpack.c.b16 %v604, %v588
    %v637 = vpack.c.b16 %v605, %v589
    %v638 = vpack.c.b16 %v606, %v590
    %v639 = vpack.c.b16 %v607, %v591
    %v640 = vpack.c.b16 %v608, %v592
    %v674 = vsel %vm128, %v396, 0
    %676 = vmatprep.subr.bf16.mxu0 %v610
    %677 = vmatpush1.bf16.msra.mxu0 %v609
    %678 = vmatprep.subr.bf16.mxu0 %v626
    %679 = vmatpush1.bf16.msra.mxu0 %v625
    %680 = vmatprep.subr.bf16.mxu0 0
    %681 = vmatpush1.bf16.msra.mxu0 0
    %682 = vmatprep.subr.bf16.mxu0 0
    %683 = vmatpush1.bf16.msra.mxu0 0
    %684 = vmatprep.subr.bf16.mxu0 0
    %685 = vmatpush1.bf16.msra.mxu0 0
    %686 = vmatprep.subr.bf16.mxu0 0
    %687 = vmatpush1.bf16.msra.mxu0 0
    %688 = vmatprep.subr.bf16.mxu0 0
    %689 = vmatpush1.bf16.msra.mxu0 0
    %690 = vmatprep.subr.bf16.mxu0 0
    %691 = vmatpush1.bf16.msra.mxu0 0
    %692 = vmatprep.subr.bf16.mxu0 0
    %693 = vmatpush1.bf16.msra.mxu0 0
    %694 = vmatprep.subr.bf16.mxu0 0
    %695 = vmatpush1.bf16.msra.mxu0 0
    %696 = vmatprep.subr.bf16.mxu0 0
    %697 = vmatpush1.bf16.msra.mxu0 0
    %698 = vmatprep.subr.bf16.mxu0 0
    %699 = vmatpush1.bf16.msra.mxu0 0
    %700 = vmatprep.subr.bf16.mxu0 0
    %701 = vmatpush1.bf16.msra.mxu0 0
    %702 = vmatprep.subr.bf16.mxu0 0
    %703 = vmatpush1.bf16.msra.mxu0 0
    %704 = vmatprep.subr.bf16.mxu0 0
    %705 = vmatpush1.bf16.msra.mxu0 0
    %706 = vmatprep.subr.bf16.mxu0 0
    %707 = vmatpush1.bf16.msra.mxu0 0
    %708 = vmatprep.mubr.bf16.mxu0 0
    %709 = vmatmul.mubr.bf16.gmra.mrb[0].mxu0 %v674
    %v710 = vpop.f32.mrb[0].mxu0
    %v711 = vadd.f32 %v436, %v710
    %v712 = vpop.f32.mrb[0].mxu0
    %v713 = vadd.f32 %v440, %v712
    %v714 = vpop.f32.mrb[0].mxu0
    %v715 = vadd.f32 %v436, %v714
    %v716 = vpop.f32.mrb[0].mxu0
    %v717 = vadd.f32 %v440, %v716
    %718 = vdwg.mxu0
    %719 = vmatprep.subr.bf16.mxu0 %v612
    %720 = vmatpush1.bf16.msra.mxu0 %v611
    %721 = vmatprep.subr.bf16.mxu0 %v628
    %722 = vmatpush1.bf16.msra.mxu0 %v627
    %723 = vmatprep.subr.bf16.mxu0 0
    %724 = vmatpush1.bf16.msra.mxu0 0
    %725 = vmatprep.subr.bf16.mxu0 0
    %726 = vmatpush1.bf16.msra.mxu0 0
    %727 = vmatprep.subr.bf16.mxu0 0
    %728 = vmatpush1.bf16.msra.mxu0 0
    %729 = vmatprep.subr.bf16.mxu0 0
    %730 = vmatpush1.bf16.msra.mxu0 0
    %731 = vmatprep.subr.bf16.mxu0 0
    %732 = vmatpush1.bf16.msra.mxu0 0
    %733 = vmatprep.subr.bf16.mxu0 0
    %734 = vmatpush1.bf16.msra.mxu0 0
    %735 = vmatprep.subr.bf16.mxu0 0
    %736 = vmatpush1.bf16.msra.mxu0 0
    %737 = vmatprep.subr.bf16.mxu0 0
    %738 = vmatpush1.bf16.msra.mxu0 0
    %739 = vmatprep.subr.bf16.mxu0 0
    %740 = vmatpush1.bf16.msra.mxu0 0
    %741 = vmatprep.subr.bf16.mxu0 0
    %742 = vmatpush1.bf16.msra.mxu0 0
    %743 = vmatprep.subr.bf16.mxu0 0
    %744 = vmatpush1.bf16.msra.mxu0 0
    %745 = vmatprep.subr.bf16.mxu0 0
    %746 = vmatpush1.bf16.msra.mxu0 0
    %747 = vmatprep.subr.bf16.mxu0 0
    %748 = vmatpush1.bf16.msra.mxu0 0
    %749 = vmatprep.subr.bf16.mxu0 0
    %750 = vmatpush1.bf16.msra.mxu0 0
    %751 = vmatprep.mubr.bf16.mxu0 0
    %752 = vmatmul.mubr.bf16.gmra.mrb[0].mxu0 %v674
    %v753 = vpop.f32.mrb[0].mxu0
    %v754 = vadd.f32 %v444, %v753
    %v755 = vpop.f32.mrb[0].mxu0
    %v756 = vadd.f32 %v448, %v755
    %v757 = vpop.f32.mrb[0].mxu0
    %v758 = vadd.f32 %v444, %v757
    %v759 = vpop.f32.mrb[0].mxu0
    %v760 = vadd.f32 %v448, %v759
    %761 = vdwg.mxu0
    %762 = vmatprep.subr.bf16.mxu0 %v614
    %763 = vmatpush1.bf16.msra.mxu0 %v613
    %764 = vmatprep.subr.bf16.mxu0 %v630
    %765 = vmatpush1.bf16.msra.mxu0 %v629
    %766 = vmatprep.subr.bf16.mxu0 0
    %767 = vmatpush1.bf16.msra.mxu0 0
    %768 = vmatprep.subr.bf16.mxu0 0
    %769 = vmatpush1.bf16.msra.mxu0 0
    %770 = vmatprep.subr.bf16.mxu0 0
    %771 = vmatpush1.bf16.msra.mxu0 0
    %772 = vmatprep.subr.bf16.mxu0 0
    %773 = vmatpush1.bf16.msra.mxu0 0
    %774 = vmatprep.subr.bf16.mxu0 0
    %775 = vmatpush1.bf16.msra.mxu0 0
    %776 = vmatprep.subr.bf16.mxu0 0
    %777 = vmatpush1.bf16.msra.mxu0 0
    %778 = vmatprep.subr.bf16.mxu0 0
    %779 = vmatpush1.bf16.msra.mxu0 0
    %780 = vmatprep.subr.bf16.mxu0 0
    %781 = vmatpush1.bf16.msra.mxu0 0
    %782 = vmatprep.subr.bf16.mxu0 0
    %783 = vmatpush1.bf16.msra.mxu0 0
    %784 = vmatprep.subr.bf16.mxu0 0
    %785 = vmatpush1.bf16.msra.mxu0 0
    %786 = vmatprep.subr.bf16.mxu0 0
    %787 = vmatpush1.bf16.msra.mxu0 0
    %788 = vmatprep.subr.bf16.mxu0 0
    %789 = vmatpush1.bf16.msra.mxu0 0
    %790 = vmatprep.subr.bf16.mxu0 0
    %791 = vmatpush1.bf16.msra.mxu0 0
    %792 = vmatprep.subr.bf16.mxu0 0
    %793 = vmatpush1.bf16.msra.mxu0 0
    %794 = vmatprep.mubr.bf16.mxu0 0
    %795 = vmatmul.mubr.bf16.gmra.mrb[0].mxu0 %v674
    %v796 = vpop.f32.mrb[0].mxu0
    %v797 = vadd.f32 %v452, %v796
    %v798 = vpop.f32.mrb[0].mxu0
    %v799 = vadd.f32 %v456, %v798
    %v800 = vpop.f32.mrb[0].mxu0
    %v801 = vadd.f32 %v452, %v800
    %v802 = vpop.f32.mrb[0].mxu0
    %v803 = vadd.f32 %v456, %v802
    %804 = vdwg.mxu0
    %805 = vmatprep.subr.bf16.mxu0 %v616
    %806 = vmatpush1.bf16.msra.mxu0 %v615
    %807 = vmatprep.subr.bf16.mxu0 %v632
    %808 = vmatpush1.bf16.msra.mxu0 %v631
    %809 = vmatprep.subr.bf16.mxu0 0
    %810 = vmatpush1.bf16.msra.mxu0 0
    %811 = vmatprep.subr.bf16.mxu0 0
    %812 = vmatpush1.bf16.msra.mxu0 0
    %813 = vmatprep.subr.bf16.mxu0 0
    %814 = vmatpush1.bf16.msra.mxu0 0
    %815 = vmatprep.subr.bf16.mxu0 0
    %816 = vmatpush1.bf16.msra.mxu0 0
    %817 = vmatprep.subr.bf16.mxu0 0
    %818 = vmatpush1.bf16.msra.mxu0 0
    %819 = vmatprep.subr.bf16.mxu0 0
    %820 = vmatpush1.bf16.msra.mxu0 0
    %821 = vmatprep.subr.bf16.mxu0 0
    %822 = vmatpush1.bf16.msra.mxu0 0
    %823 = vmatprep.subr.bf16.mxu0 0
    %824 = vmatpush1.bf16.msra.mxu0 0
    %825 = vmatprep.subr.bf16.mxu0 0
    %826 = vmatpush1.bf16.msra.mxu0 0
    %827 = vmatprep.subr.bf16.mxu0 0
    %828 = vmatpush1.bf16.msra.mxu0 0
    %829 = vmatprep.subr.bf16.mxu0 0
    %830 = vmatpush1.bf16.msra.mxu0 0
    %831 = vmatprep.subr.bf16.mxu0 0
    %832 = vmatpush1.bf16.msra.mxu0 0
    %833 = vmatprep.subr.bf16.mxu0 0
    %834 = vmatpush1.bf16.msra.mxu0 0
    %835 = vmatprep.subr.bf16.mxu0 0
    %836 = vmatpush1.bf16.msra.mxu0 0
    %837 = vmatprep.mubr.bf16.mxu0 0
    %838 = vmatmul.mubr.bf16.gmra.mrb[0].mxu0 %v674
    %v839 = vpop.f32.mrb[0].mxu0
    %v840 = vadd.f32 %v460, %v839
    %v841 = vpop.f32.mrb[0].mxu0
    %v842 = vadd.f32 %v464, %v841
    %v843 = vpop.f32.mrb[0].mxu0
    %v844 = vadd.f32 %v460, %v843
    %v845 = vpop.f32.mrb[0].mxu0
    %v846 = vadd.f32 %v464, %v845
    %847 = vdwg.mxu0
    %848 = vmatprep.subr.bf16.mxu0 %v618
    %849 = vmatpush1.bf16.msra.mxu0 %v617
    %850 = vmatprep.subr.bf16.mxu0 %v634
    %851 = vmatpush1.bf16.msra.mxu0 %v633
    %852 = vmatprep.subr.bf16.mxu0 0
    %853 = vmatpush1.bf16.msra.mxu0 0
    %854 = vmatprep.subr.bf16.mxu0 0
    %855 = vmatpush1.bf16.msra.mxu0 0
    %856 = vmatprep.subr.bf16.mxu0 0
    %857 = vmatpush1.bf16.msra.mxu0 0
    %858 = vmatprep.subr.bf16.mxu0 0
    %859 = vmatpush1.bf16.msra.mxu0 0
    %860 = vmatprep.subr.bf16.mxu0 0
    %861 = vmatpush1.bf16.msra.mxu0 0
    %862 = vmatprep.subr.bf16.mxu0 0
    %863 = vmatpush1.bf16.msra.mxu0 0
    %864 = vmatprep.subr.bf16.mxu0 0
    %865 = vmatpush1.bf16.msra.mxu0 0
    %866 = vmatprep.subr.bf16.mxu0 0
    %867 = vmatpush1.bf16.msra.mxu0 0
    %868 = vmatprep.subr.bf16.mxu0 0
    %869 = vmatpush1.bf16.msra.mxu0 0
    %870 = vmatprep.subr.bf16.mxu0 0
    %871 = vmatpush1.bf16.msra.mxu0 0
    %872 = vmatprep.subr.bf16.mxu0 0
    %873 = vmatpush1.bf16.msra.mxu0 0
    %874 = vmatprep.subr.bf16.mxu0 0
    %875 = vmatpush1.bf16.msra.mxu0 0
    %876 = vmatprep.subr.bf16.mxu0 0
    %877 = vmatpush1.bf16.msra.mxu0 0
    %878 = vmatprep.subr.bf16.mxu0 0
    %879 = vmatpush1.bf16.msra.mxu0 0
    %880 = vmatprep.mubr.bf16.mxu0 0
    %881 = vmatmul.mubr.bf16.gmra.mrb[0].mxu0 %v674
    %v882 = vpop.f32.mrb[0].mxu0
    %v883 = vadd.f32 %v468, %v882
    %v884 = vpop.f32.mrb[0].mxu0
    %v885 = vadd.f32 %v472, %v884
    %v886 = vpop.f32.mrb[0].mxu0
    %v887 = vadd.f32 %v468, %v886
    %v888 = vpop.f32.mrb[0].mxu0
    %v889 = vadd.f32 %v472, %v888
    %890 = vdwg.mxu0
    %891 = vmatprep.subr.bf16.mxu0 %v620
    %892 = vmatpush1.bf16.msra.mxu0 %v619
    %893 = vmatprep.subr.bf16.mxu0 %v636
    %894 = vmatpush1.bf16.msra.mxu0 %v635
    %895 = vmatprep.subr.bf16.mxu0 0
    %896 = vmatpush1.bf16.msra.mxu0 0
    %897 = vmatprep.subr.bf16.mxu0 0
    %898 = vmatpush1.bf16.msra.mxu0 0
    %899 = vmatprep.subr.bf16.mxu0 0
    %900 = vmatpush1.bf16.msra.mxu0 0
    %901 = vmatprep.subr.bf16.mxu0 0
    %902 = vmatpush1.bf16.msra.mxu0 0
    %903 = vmatprep.subr.bf16.mxu0 0
    %904 = vmatpush1.bf16.msra.mxu0 0
    %905 = vmatprep.subr.bf16.mxu0 0
    %906 = vmatpush1.bf16.msra.mxu0 0
    %907 = vmatprep.subr.bf16.mxu0 0
    %908 = vmatpush1.bf16.msra.mxu0 0
    %909 = vmatprep.subr.bf16.mxu0 0
    %910 = vmatpush1.bf16.msra.mxu0 0
    %911 = vmatprep.subr.bf16.mxu0 0
    %912 = vmatpush1.bf16.msra.mxu0 0
    %913 = vmatprep.subr.bf16.mxu0 0
    %914 = vmatpush1.bf16.msra.mxu0 0
    %915 = vmatprep.subr.bf16.mxu0 0
    %916 = vmatpush1.bf16.msra.mxu0 0
    %917 = vmatprep.subr.bf16.mxu0 0
    %918 = vmatpush1.bf16.msra.mxu0 0
    %919 = vmatprep.subr.bf16.mxu0 0
    %920 = vmatpush1.bf16.msra.mxu0 0
    %921 = vmatprep.subr.bf16.mxu0 0
    %922 = vmatpush1.bf16.msra.mxu0 0
    %923 = vmatprep.mubr.bf16.mxu0 0
    %924 = vmatmul.mubr.bf16.gmra.mrb[0].mxu0 %v674
    %v925 = vpop.f32.mrb[0].mxu0
    %v926 = vadd.f32 %v476, %v925
    %v927 = vpop.f32.mrb[0].mxu0
    %v928 = vadd.f32 %v480, %v927
    %v929 = vpop.f32.mrb[0].mxu0
    %v930 = vadd.f32 %v476, %v929
    %v931 = vpop.f32.mrb[0].mxu0
    %v932 = vadd.f32 %v480, %v931
    %933 = vdwg.mxu0
    %934 = vmatprep.subr.bf16.mxu0 %v622
    %935 = vmatpush1.bf16.msra.mxu0 %v621
    %936 = vmatprep.subr.bf16.mxu0 %v638
    %937 = vmatpush1.bf16.msra.mxu0 %v637
    %938 = vmatprep.subr.bf16.mxu0 0
    %939 = vmatpush1.bf16.msra.mxu0 0
    %940 = vmatprep.subr.bf16.mxu0 0
    %941 = vmatpush1.bf16.msra.mxu0 0
    %942 = vmatprep.subr.bf16.mxu0 0
    %943 = vmatpush1.bf16.msra.mxu0 0
    %944 = vmatprep.subr.bf16.mxu0 0
    %945 = vmatpush1.bf16.msra.mxu0 0
    %946 = vmatprep.subr.bf16.mxu0 0
    %947 = vmatpush1.bf16.msra.mxu0 0
    %948 = vmatprep.subr.bf16.mxu0 0
    %949 = vmatpush1.bf16.msra.mxu0 0
    %950 = vmatprep.subr.bf16.mxu0 0
    %951 = vmatpush1.bf16.msra.mxu0 0
    %952 = vmatprep.subr.bf16.mxu0 0
    %953 = vmatpush1.bf16.msra.mxu0 0
    %954 = vmatprep.subr.bf16.mxu0 0
    %955 = vmatpush1.bf16.msra.mxu0 0
    %956 = vmatprep.subr.bf16.mxu0 0
    %957 = vmatpush1.bf16.msra.mxu0 0
    %958 = vmatprep.subr.bf16.mxu0 0
    %959 = vmatpush1.bf16.msra.mxu0 0
    %960 = vmatprep.subr.bf16.mxu0 0
    %961 = vmatpush1.bf16.msra.mxu0 0
    %962 = vmatprep.subr.bf16.mxu0 0
    %963 = vmatpush1.bf16.msra.mxu0 0
    %964 = vmatprep.subr.bf16.mxu0 0
    %965 = vmatpush1.bf16.msra.mxu0 0
    %966 = vmatprep.mubr.bf16.mxu0 0
    %967 = vmatmul.mubr.bf16.gmra.mrb[0].mxu0 %v674
    %v968 = vpop.f32.mrb[0].mxu0
    %v969 = vadd.f32 %v484, %v968
    %v970 = vpop.f32.mrb[0].mxu0
    %v971 = vadd.f32 %v488, %v970
    %v972 = vpop.f32.mrb[0].mxu0
    %v973 = vadd.f32 %v484, %v972
    %v974 = vpop.f32.mrb[0].mxu0
    %v975 = vadd.f32 %v488, %v974
    %976 = vdwg.mxu0
    %977 = vmatprep.subr.bf16.mxu0 %v624
    %978 = vmatpush1.bf16.msra.mxu0 %v623
    %979 = vmatprep.subr.bf16.mxu0 %v640
    %980 = vmatpush1.bf16.msra.mxu0 %v639
    %981 = vmatprep.subr.bf16.mxu0 0
    %982 = vmatpush1.bf16.msra.mxu0 0
    %983 = vmatprep.subr.bf16.mxu0 0
    %984 = vmatpush1.bf16.msra.mxu0 0
    %985 = vmatprep.subr.bf16.mxu0 0
    %986 = vmatpush1.bf16.msra.mxu0 0
    %987 = vmatprep.subr.bf16.mxu0 0
    %988 = vmatpush1.bf16.msra.mxu0 0
    %989 = vmatprep.subr.bf16.mxu0 0
    %990 = vmatpush1.bf16.msra.mxu0 0
    %991 = vmatprep.subr.bf16.mxu0 0
    %992 = vmatpush1.bf16.msra.mxu0 0
    %993 = vmatprep.subr.bf16.mxu0 0
    %994 = vmatpush1.bf16.msra.mxu0 0
    %995 = vmatprep.subr.bf16.mxu0 0
    %996 = vmatpush1.bf16.msra.mxu0 0
    %997 = vmatprep.subr.bf16.mxu0 0
    %998 = vmatpush1.bf16.msra.mxu0 0
    %999 = vmatprep.subr.bf16.mxu0 0
    %1000 = vmatpush1.bf16.msra.mxu0 0
    %1001 = vmatprep.subr.bf16.mxu0 0
    %1002 = vmatpush1.bf16.msra.mxu0 0
    %1003 = vmatprep.subr.bf16.mxu0 0
    %1004 = vmatpush1.bf16.msra.mxu0 0
    %1005 = vmatprep.subr.bf16.mxu0 0
    %1006 = vmatpush1.bf16.msra.mxu0 0
    %1007 = vmatprep.subr.bf16.mxu0 0
    %1008 = vmatpush1.bf16.msra.mxu0 0
    %1009 = vmatprep.mubr.bf16.mxu0 0
    %1010 = vmatmul.mubr.bf16.gmra.mrb[0].mxu0 %v674
    %v1011 = vpop.f32.mrb[0].mxu0
    %v1012 = vadd.f32 %v492, %v1011
    %v1013 = vpop.f32.mrb[0].mxu0
    %v1014 = vadd.f32 %v496, %v1013
    %v1015 = vpop.f32.mrb[0].mxu0
    %v1016 = vadd.f32 %v492, %v1015
    %v1017 = vpop.f32.mrb[0].mxu0
    %v1018 = vadd.f32 %v496, %v1017
    %1019 = vdwg.mxu0
    %v1020 = vmax.f32 %v711, 0.0
    %v1021 = vmax.f32 %v713, 0.0
    %v1022 = vmax.f32 %v754, 0.0
    %v1023 = vmax.f32 %v756, 0.0
    %v1024 = vmax.f32 %v797, 0.0
    %v1025 = vmax.f32 %v799, 0.0
    %v1026 = vmax.f32 %v840, 0.0
    %v1027 = vmax.f32 %v842, 0.0
    %v1028 = vmax.f32 %v883, 0.0
    %v1029 = vmax.f32 %v885, 0.0
    %v1030 = vmax.f32 %v926, 0.0
    %v1031 = vmax.f32 %v928, 0.0
    %v1032 = vmax.f32 %v969, 0.0
    %v1033 = vmax.f32 %v971, 0.0
    %v1034 = vmax.f32 %v1012, 0.0
    %v1035 = vmax.f32 %v1014, 0.0
    %v1036 = vmax.f32 %v715, 0.0
    %v1037 = vmax.f32 %v717, 0.0
    %v1038 = vmax.f32 %v758, 0.0
    %v1039 = vmax.f32 %v760, 0.0
    %v1040 = vmax.f32 %v801, 0.0
    %v1041 = vmax.f32 %v803, 0.0
    %v1042 = vmax.f32 %v844, 0.0
    %v1043 = vmax.f32 %v846, 0.0
    %v1044 = vmax.f32 %v887, 0.0
    %v1045 = vmax.f32 %v889, 0.0
    %v1046 = vmax.f32 %v930, 0.0
    %v1047 = vmax.f32 %v932, 0.0
    %v1048 = vmax.f32 %v973, 0.0
    %v1049 = vmax.f32 %v975, 0.0
    %v1050 = vmax.f32 %v1016, 0.0
    %v1051 = vmax.f32 %v1018, 0.0
    %v1052 = vpack.c.bf16 %v1036, %v1020
    %v1053 = vpack.c.bf16 %v1037, %v1021
    %v1054 = vpack.c.bf16 %v1038, %v1022
    %v1055 = vpack.c.bf16 %v1039, %v1023
    %v1056 = vpack.c.bf16 %v1040, %v1024
    %v1057 = vpack.c.bf16 %v1041, %v1025
    %v1058 = vpack.c.bf16 %v1042, %v1026
    %v1059 = vpack.c.bf16 %v1043, %v1027
    %v1060 = vpack.c.bf16 %v1044, %v1028
    %v1061 = vpack.c.bf16 %v1045, %v1029
    %v1062 = vpack.c.bf16 %v1046, %v1030
    %v1063 = vpack.c.bf16 %v1047, %v1031
    %v1064 = vpack.c.bf16 %v1048, %v1032
    %v1065 = vpack.c.bf16 %v1049, %v1033
    %v1066 = vpack.c.bf16 %v1050, %v1034
    %v1067 = vpack.c.bf16 %v1051, %v1035
    %v1068 = vld [vmem:[#allocation11] sm:$0xf]
    %v1069 = vld [vmem:[#allocation11 + $0x4] sm:$0xf]
    %v1070 = vld [vmem:[#allocation11 + $0x8] sm:$0xf]
    %v1071 = vld [vmem:[#allocation11 + $0xc] sm:$0xf]
    %v1072 = vld [vmem:[#allocation11 + $0x10] sm:$0xf]
    %v1073 = vld [vmem:[#allocation11 + $0x14] sm:$0xf]
    %v1074 = vld [vmem:[#allocation11 + $0x18] sm:$0xf]
    %v1075 = vld [vmem:[#allocation11 + $0x1c] sm:$0xf]
    %v1076 = vld [vmem:[#allocation11 + $0x20] sm:$0xf]
    %v1077 = vld [vmem:[#allocation11 + $0x24] sm:$0xf]
    %v1078 = vld [vmem:[#allocation11 + $0x28] sm:$0xf]
    %v1079 = vld [vmem:[#allocation11 + $0x2c] sm:$0xf]
    %v1080 = vld [vmem:[#allocation11 + $0x30] sm:$0xf]
    %v1081 = vld [vmem:[#allocation11 + $0x34] sm:$0xf]
    %v1082 = vld [vmem:[#allocation11 + $0x38] sm:$0xf]
    %v1083 = vld [vmem:[#allocation11 + $0x3c] sm:$0xf]
    %v1084 = vld [vmem:[#allocation11 + $0x40] sm:$0xf]
    %v1085 = vld [vmem:[#allocation11 + $0x44] sm:$0xf]
    %v1086 = vld [vmem:[#allocation11 + $0x48] sm:$0xf]
    %v1087 = vld [vmem:[#allocation11 + $0x4c] sm:$0xf]
    %v1088 = vld [vmem:[#allocation11 + $0x50] sm:$0xf]
    %v1089 = vld [vmem:[#allocation11 + $0x54] sm:$0xf]
    %v1090 = vld [vmem:[#allocation11 + $0x58] sm:$0xf]
    %v1091 = vld [vmem:[#allocation11 + $0x5c] sm:$0xf]
    %v1092 = vld [vmem:[#allocation11 + $0x60] sm:$0xf]
    %v1093 = vld [vmem:[#allocation11 + $0x64] sm:$0xf]
    %v1094 = vld [vmem:[#allocation11 + $0x68] sm:$0xf]
    %v1095 = vld [vmem:[#allocation11 + $0x6c] sm:$0xf]
    %v1096 = vld [vmem:[#allocation11 + $0x70] sm:$0xf]
    %v1097 = vld [vmem:[#allocation11 + $0x74] sm:$0xf]
    %v1098 = vld [vmem:[#allocation11 + $0x78] sm:$0xf]
    %v1099 = vld [vmem:[#allocation11 + $0x7c] sm:$0xf]
    %v1100 = vld [vmem:[#allocation11 + $0x80] sm:$0xf]
    %v1101 = vld [vmem:[#allocation11 + $0x84] sm:$0xf]
    %v1102 = vld [vmem:[#allocation11 + $0x88] sm:$0xf]
    %v1103 = vld [vmem:[#allocation11 + $0x8c] sm:$0xf]
    %v1104 = vld [vmem:[#allocation11 + $0x90] sm:$0xf]
    %v1105 = vld [vmem:[#allocation11 + $0x94] sm:$0xf]
    %v1106 = vld [vmem:[#allocation11 + $0x98] sm:$0xf]
    %v1107 = vld [vmem:[#allocation11 + $0x9c] sm:$0xf]
    %v1108 = vld [vmem:[#allocation11 + $0xa0] sm:$0xf]
    %v1109 = vld [vmem:[#allocation11 + $0xa4] sm:$0xf]
    %v1110 = vld [vmem:[#allocation11 + $0xa8] sm:$0xf]
    %v1111 = vld [vmem:[#allocation11 + $0xac] sm:$0xf]
    %v1112 = vld [vmem:[#allocation11 + $0xb0] sm:$0xf]
    %v1113 = vld [vmem:[#allocation11 + $0xb4] sm:$0xf]
    %v1114 = vld [vmem:[#allocation11 + $0xb8] sm:$0xf]
    %v1115 = vld [vmem:[#allocation11 + $0xbc] sm:$0xf]
    %v1116 = vld [vmem:[#allocation11 + $0xc0] sm:$0xf]
    %v1117 = vld [vmem:[#allocation11 + $0xc4] sm:$0xf]
    %v1118 = vld [vmem:[#allocation11 + $0xc8] sm:$0xf]
    %v1119 = vld [vmem:[#allocation11 + $0xcc] sm:$0xf]
    %v1120 = vld [vmem:[#allocation11 + $0xd0] sm:$0xf]
    %v1121 = vld [vmem:[#allocation11 + $0xd4] sm:$0xf]
    %v1122 = vld [vmem:[#allocation11 + $0xd8] sm:$0xf]
    %v1123 = vld [vmem:[#allocation11 + $0xdc] sm:$0xf]
    %v1124 = vld [vmem:[#allocation11 + $0xe0] sm:$0xf]
    %v1125 = vld [vmem:[#allocation11 + $0xe4] sm:$0xf]
    %v1126 = vld [vmem:[#allocation11 + $0xe8] sm:$0xf]
    %v1127 = vld [vmem:[#allocation11 + $0xec] sm:$0xf]
    %v1128 = vld [vmem:[#allocation11 + $0xf0] sm:$0xf]
    %v1129 = vld [vmem:[#allocation11 + $0xf4] sm:$0xf]
    %v1130 = vld [vmem:[#allocation11 + $0xf8] sm:$0xf]
    %v1131 = vld [vmem:[#allocation11 + $0xfc] sm:$0xf]
    %v1132 = vld [vmem:[#allocation11 + $0x100] sm:$0xf]
    %v1133 = vld [vmem:[#allocation11 + $0x104] sm:$0xf]
    %v1134 = vld [vmem:[#allocation11 + $0x108] sm:$0xf]
    %v1135 = vld [vmem:[#allocation11 + $0x10c] sm:$0xf]
    %v1136 = vld [vmem:[#allocation11 + $0x110] sm:$0xf]
    %v1137 = vld [vmem:[#allocation11 + $0x114] sm:$0xf]
    %v1138 = vld [vmem:[#allocation11 + $0x118] sm:$0xf]
    %v1139 = vld [vmem:[#allocation11 + $0x11c] sm:$0xf]
    %v1140 = vld [vmem:[#allocation11 + $0x120] sm:$0xf]
    %v1141 = vld [vmem:[#allocation11 + $0x124] sm:$0xf]
    %v1142 = vld [vmem:[#allocation11 + $0x128] sm:$0xf]
    %v1143 = vld [vmem:[#allocation11 + $0x12c] sm:$0xf]
    %v1144 = vld [vmem:[#allocation11 + $0x130] sm:$0xf]
    %v1145 = vld [vmem:[#allocation11 + $0x134] sm:$0xf]
    %v1146 = vld [vmem:[#allocation11 + $0x138] sm:$0xf]
    %v1147 = vld [vmem:[#allocation11 + $0x13c] sm:$0xf]
    %v1148 = vld [vmem:[#allocation11 + $0x140] sm:$0xf]
    %v1149 = vld [vmem:[#allocation11 + $0x144] sm:$0xf]
    %v1150 = vld [vmem:[#allocation11 + $0x148] sm:$0xf]
    %v1151 = vld [vmem:[#allocation11 + $0x14c] sm:$0xf]
    %v1152 = vld [vmem:[#allocation11 + $0x150] sm:$0xf]
    %v1153 = vld [vmem:[#allocation11 + $0x154] sm:$0xf]
    %v1154 = vld [vmem:[#allocation11 + $0x158] sm:$0xf]
    %v1155 = vld [vmem:[#allocation11 + $0x15c] sm:$0xf]
    %v1156 = vld [vmem:[#allocation11 + $0x160] sm:$0xf]
    %v1157 = vld [vmem:[#allocation11 + $0x164] sm:$0xf]
    %v1158 = vld [vmem:[#allocation11 + $0x168] sm:$0xf]
    %v1159 = vld [vmem:[#allocation11 + $0x16c] sm:$0xf]
    %v1160 = vld [vmem:[#allocation11 + $0x170] sm:$0xf]
    %v1161 = vld [vmem:[#allocation11 + $0x174] sm:$0xf]
    %v1162 = vld [vmem:[#allocation11 + $0x178] sm:$0xf]
    %v1163 = vld [vmem:[#allocation11 + $0x17c] sm:$0xf]
    %v1164 = vld [vmem:[#allocation11 + $0x180] sm:$0xf]
    %v1165 = vld [vmem:[#allocation11 + $0x184] sm:$0xf]
    %v1166 = vld [vmem:[#allocation11 + $0x188] sm:$0xf]
    %v1167 = vld [vmem:[#allocation11 + $0x18c] sm:$0xf]
    %v1168 = vld [vmem:[#allocation11 + $0x190] sm:$0xf]
    %v1169 = vld [vmem:[#allocation11 + $0x194] sm:$0xf]
    %v1170 = vld [vmem:[#allocation11 + $0x198] sm:$0xf]
    %v1171 = vld [vmem:[#allocation11 + $0x19c] sm:$0xf]
    %v1172 = vld [vmem:[#allocation11 + $0x1a0] sm:$0xf]
    %v1173 = vld [vmem:[#allocation11 + $0x1a4] sm:$0xf]
    %v1174 = vld [vmem:[#allocation11 + $0x1a8] sm:$0xf]
    %v1175 = vld [vmem:[#allocation11 + $0x1ac] sm:$0xf]
    %v1176 = vld [vmem:[#allocation11 + $0x1b0] sm:$0xf]
    %v1177 = vld [vmem:[#allocation11 + $0x1b4] sm:$0xf]
    %v1178 = vld [vmem:[#allocation11 + $0x1b8] sm:$0xf]
    %v1179 = vld [vmem:[#allocation11 + $0x1bc] sm:$0xf]
    %v1180 = vld [vmem:[#allocation11 + $0x1c0] sm:$0xf]
    %v1181 = vld [vmem:[#allocation11 + $0x1c4] sm:$0xf]
    %v1182 = vld [vmem:[#allocation11 + $0x1c8] sm:$0xf]
    %v1183 = vld [vmem:[#allocation11 + $0x1cc] sm:$0xf]
    %v1184 = vld [vmem:[#allocation11 + $0x1d0] sm:$0xf]
    %v1185 = vld [vmem:[#allocation11 + $0x1d4] sm:$0xf]
    %v1186 = vld [vmem:[#allocation11 + $0x1d8] sm:$0xf]
    %v1187 = vld [vmem:[#allocation11 + $0x1dc] sm:$0xf]
    %v1188 = vld [vmem:[#allocation11 + $0x1e0] sm:$0xf]
    %v1189 = vld [vmem:[#allocation11 + $0x1e4] sm:$0xf]
    %v1190 = vld [vmem:[#allocation11 + $0x1e8] sm:$0xf]
    %v1191 = vld [vmem:[#allocation11 + $0x1ec] sm:$0xf]
    %v1192 = vld [vmem:[#allocation11 + $0x1f0] sm:$0xf]
    %v1193 = vld [vmem:[#allocation11 + $0x1f4] sm:$0xf]
    %v1194 = vld [vmem:[#allocation11 + $0x1f8] sm:$0xf]
    %v1195 = vld [vmem:[#allocation11 + $0x1fc] sm:$0xf]
    %v1196 = vld [vmem:[#allocation11 + $0x200] sm:$0xf]
    %v1197 = vld [vmem:[#allocation11 + $0x204] sm:$0xf]
    %v1198 = vld [vmem:[#allocation11 + $0x208] sm:$0xf]
    %v1199 = vld [vmem:[#allocation11 + $0x20c] sm:$0xf]
    %v1200 = vld [vmem:[#allocation11 + $0x210] sm:$0xf]
    %v1201 = vld [vmem:[#allocation11 + $0x214] sm:$0xf]
    %v1202 = vld [vmem:[#allocation11 + $0x218] sm:$0xf]
    %v1203 = vld [vmem:[#allocation11 + $0x21c] sm:$0xf]
    %v1204 = vld [vmem:[#allocation11 + $0x220] sm:$0xf]
    %v1205 = vld [vmem:[#allocation11 + $0x224] sm:$0xf]
    %v1206 = vld [vmem:[#allocation11 + $0x228] sm:$0xf]
    %v1207 = vld [vmem:[#allocation11 + $0x22c] sm:$0xf]
    %v1208 = vld [vmem:[#allocation11 + $0x230] sm:$0xf]
    %v1209 = vld [vmem:[#allocation11 + $0x234] sm:$0xf]
    %v1210 = vld [vmem:[#allocation11 + $0x238] sm:$0xf]
    %v1211 = vld [vmem:[#allocation11 + $0x23c] sm:$0xf]
    %v1212 = vld [vmem:[#allocation11 + $0x240] sm:$0xf]
    %v1213 = vld [vmem:[#allocation11 + $0x244] sm:$0xf]
    %v1214 = vld [vmem:[#allocation11 + $0x248] sm:$0xf]
    %v1215 = vld [vmem:[#allocation11 + $0x24c] sm:$0xf]
    %v1216 = vld [vmem:[#allocation11 + $0x250] sm:$0xf]
    %v1217 = vld [vmem:[#allocation11 + $0x254] sm:$0xf]
    %v1218 = vld [vmem:[#allocation11 + $0x258] sm:$0xf]
    %v1219 = vld [vmem:[#allocation11 + $0x25c] sm:$0xf]
    %v1220 = vld [vmem:[#allocation11 + $0x260] sm:$0xf]
    %v1221 = vld [vmem:[#allocation11 + $0x264] sm:$0xf]
    %v1222 = vld [vmem:[#allocation11 + $0x268] sm:$0xf]
    %v1223 = vld [vmem:[#allocation11 + $0x26c] sm:$0xf]
    %v1224 = vld [vmem:[#allocation11 + $0x270] sm:$0xf]
    %v1225 = vld [vmem:[#allocation11 + $0x274] sm:$0xf]
    %v1226 = vld [vmem:[#allocation11 + $0x278] sm:$0xf]
    %v1227 = vld [vmem:[#allocation11 + $0x27c] sm:$0xf]
    %v1228 = vld [vmem:[#allocation11 + $0x280] sm:$0xf]
    %v1229 = vld [vmem:[#allocation11 + $0x284] sm:$0xf]
    %v1230 = vld [vmem:[#allocation11 + $0x288] sm:$0xf]
    %v1231 = vld [vmem:[#allocation11 + $0x28c] sm:$0xf]
    %v1232 = vld [vmem:[#allocation11 + $0x290] sm:$0xf]
    %v1233 = vld [vmem:[#allocation11 + $0x294] sm:$0xf]
    %v1234 = vld [vmem:[#allocation11 + $0x298] sm:$0xf]
    %v1235 = vld [vmem:[#allocation11 + $0x29c] sm:$0xf]
    %v1236 = vld [vmem:[#allocation11 + $0x2a0] sm:$0xf]
    %v1237 = vld [vmem:[#allocation11 + $0x2a4] sm:$0xf]
    %v1238 = vld [vmem:[#allocation11 + $0x2a8] sm:$0xf]
    %v1239 = vld [vmem:[#allocation11 + $0x2ac] sm:$0xf]
    %v1240 = vld [vmem:[#allocation11 + $0x2b0] sm:$0xf]
    %v1241 = vld [vmem:[#allocation11 + $0x2b4] sm:$0xf]
    %v1242 = vld [vmem:[#allocation11 + $0x2b8] sm:$0xf]
    %v1243 = vld [vmem:[#allocation11 + $0x2bc] sm:$0xf]
    %v1244 = vld [vmem:[#allocation11 + $0x2c0] sm:$0xf]
    %v1245 = vld [vmem:[#allocation11 + $0x2c4] sm:$0xf]
    %v1246 = vld [vmem:[#allocation11 + $0x2c8] sm:$0xf]
    %v1247 = vld [vmem:[#allocation11 + $0x2cc] sm:$0xf]
    %v1248 = vld [vmem:[#allocation11 + $0x2d0] sm:$0xf]
    %v1249 = vld [vmem:[#allocation11 + $0x2d4] sm:$0xf]
    %v1250 = vld [vmem:[#allocation11 + $0x2d8] sm:$0xf]
    %v1251 = vld [vmem:[#allocation11 + $0x2dc] sm:$0xf]
    %v1252 = vld [vmem:[#allocation11 + $0x2e0] sm:$0xf]
    %v1253 = vld [vmem:[#allocation11 + $0x2e4] sm:$0xf]
    %v1254 = vld [vmem:[#allocation11 + $0x2e8] sm:$0xf]
    %v1255 = vld [vmem:[#allocation11 + $0x2ec] sm:$0xf]
    %v1256 = vld [vmem:[#allocation11 + $0x2f0] sm:$0xf]
    %v1257 = vld [vmem:[#allocation11 + $0x2f4] sm:$0xf]
    %v1258 = vld [vmem:[#allocation11 + $0x2f8] sm:$0xf]
    %v1259 = vld [vmem:[#allocation11 + $0x2fc] sm:$0xf]
    %v1260 = vld [vmem:[#allocation11 + $0x300] sm:$0xf]
    %v1261 = vld [vmem:[#allocation11 + $0x304] sm:$0xf]
    %v1262 = vld [vmem:[#allocation11 + $0x308] sm:$0xf]
    %v1263 = vld [vmem:[#allocation11 + $0x30c] sm:$0xf]
    %v1264 = vld [vmem:[#allocation11 + $0x310] sm:$0xf]
    %v1265 = vld [vmem:[#allocation11 + $0x314] sm:$0xf]
    %v1266 = vld [vmem:[#allocation11 + $0x318] sm:$0xf]
    %v1267 = vld [vmem:[#allocation11 + $0x31c] sm:$0xf]
    %v1268 = vld [vmem:[#allocation11 + $0x320] sm:$0xf]
    %v1269 = vld [vmem:[#allocation11 + $0x324] sm:$0xf]
    %v1270 = vld [vmem:[#allocation11 + $0x328] sm:$0xf]
    %v1271 = vld [vmem:[#allocation11 + $0x32c] sm:$0xf]
    %v1272 = vld [vmem:[#allocation11 + $0x330] sm:$0xf]
    %v1273 = vld [vmem:[#allocation11 + $0x334] sm:$0xf]
    %v1274 = vld [vmem:[#allocation11 + $0x338] sm:$0xf]
    %v1275 = vld [vmem:[#allocation11 + $0x33c] sm:$0xf]
    %v1276 = vld [vmem:[#allocation11 + $0x340] sm:$0xf]
    %v1277 = vld [vmem:[#allocation11 + $0x344] sm:$0xf]
    %v1278 = vld [vmem:[#allocation11 + $0x348] sm:$0xf]
    %v1279 = vld [vmem:[#allocation11 + $0x34c] sm:$0xf]
    %v1280 = vld [vmem:[#allocation11 + $0x350] sm:$0xf]
    %v1281 = vld [vmem:[#allocation11 + $0x354] sm:$0xf]
    %v1282 = vld [vmem:[#allocation11 + $0x358] sm:$0xf]
    %v1283 = vld [vmem:[#allocation11 + $0x35c] sm:$0xf]
    %v1284 = vld [vmem:[#allocation11 + $0x360] sm:$0xf]
    %v1285 = vld [vmem:[#allocation11 + $0x364] sm:$0xf]
    %v1286 = vld [vmem:[#allocation11 + $0x368] sm:$0xf]
    %v1287 = vld [vmem:[#allocation11 + $0x36c] sm:$0xf]
    %v1288 = vld [vmem:[#allocation11 + $0x370] sm:$0xf]
    %v1289 = vld [vmem:[#allocation11 + $0x374] sm:$0xf]
    %v1290 = vld [vmem:[#allocation11 + $0x378] sm:$0xf]
    %v1291 = vld [vmem:[#allocation11 + $0x37c] sm:$0xf]
    %v1292 = vld [vmem:[#allocation11 + $0x380] sm:$0xf]
    %v1293 = vld [vmem:[#allocation11 + $0x384] sm:$0xf]
    %v1294 = vld [vmem:[#allocation11 + $0x388] sm:$0xf]
    %v1295 = vld [vmem:[#allocation11 + $0x38c] sm:$0xf]
    %v1296 = vld [vmem:[#allocation11 + $0x390] sm:$0xf]
    %v1297 = vld [vmem:[#allocation11 + $0x394] sm:$0xf]
    %v1298 = vld [vmem:[#allocation11 + $0x398] sm:$0xf]
    %v1299 = vld [vmem:[#allocation11 + $0x39c] sm:$0xf]
    %v1300 = vld [vmem:[#allocation11 + $0x3a0] sm:$0xf]
    %v1301 = vld [vmem:[#allocation11 + $0x3a4] sm:$0xf]
    %v1302 = vld [vmem:[#allocation11 + $0x3a8] sm:$0xf]
    %v1303 = vld [vmem:[#allocation11 + $0x3ac] sm:$0xf]
    %v1304 = vld [vmem:[#allocation11 + $0x3b0] sm:$0xf]
    %v1305 = vld [vmem:[#allocation11 + $0x3b4] sm:$0xf]
    %v1306 = vld [vmem:[#allocation11 + $0x3b8] sm:$0xf]
    %v1307 = vld [vmem:[#allocation11 + $0x3bc] sm:$0xf]
    %v1308 = vld [vmem:[#allocation11 + $0x3c0] sm:$0xf]
    %v1309 = vld [vmem:[#allocation11 + $0x3c4] sm:$0xf]
    %v1310 = vld [vmem:[#allocation11 + $0x3c8] sm:$0xf]
    %v1311 = vld [vmem:[#allocation11 + $0x3cc] sm:$0xf]
    %v1312 = vld [vmem:[#allocation11 + $0x3d0] sm:$0xf]
    %v1313 = vld [vmem:[#allocation11 + $0x3d4] sm:$0xf]
    %v1314 = vld [vmem:[#allocation11 + $0x3d8] sm:$0xf]
    %v1315 = vld [vmem:[#allocation11 + $0x3dc] sm:$0xf]
    %v1316 = vld [vmem:[#allocation11 + $0x3e0] sm:$0xf]
    %v1317 = vld [vmem:[#allocation11 + $0x3e4] sm:$0xf]
    %v1318 = vld [vmem:[#allocation11 + $0x3e8] sm:$0xf]
    %v1319 = vld [vmem:[#allocation11 + $0x3ec] sm:$0xf]
    %v1320 = vld [vmem:[#allocation11 + $0x3f0] sm:$0xf]
    %v1321 = vld [vmem:[#allocation11 + $0x3f4] sm:$0xf]
    %v1322 = vld [vmem:[#allocation11 + $0x3f8] sm:$0xf]
    %v1323 = vld [vmem:[#allocation11 + $0x3fc] sm:$0xf]
    %v1324 = vlaneseq
    %v1325 = vshrl.u32 %v1324, 7
    %v1326 = vsub.s32 1, %v1325
    %v1327 = vrot.slane %v108, %v1326
    %v1584 = vunpack.c.l.b16 %v1068
    %v1585 = vunpack.c.l.b16 %v1069
    %v1586 = vunpack.c.l.b16 %v1070
    %v1587 = vunpack.c.l.b16 %v1071
    %v1588 = vunpack.c.l.b16 %v1072
    %v1589 = vunpack.c.l.b16 %v1073
    %v1590 = vunpack.c.l.b16 %v1074
    %v1591 = vunpack.c.l.b16 %v1075
    %v1592 = vunpack.c.l.b16 %v1076
    %v1593 = vunpack.c.l.b16 %v1077
    %v1594 = vunpack.c.l.b16 %v1078
    %v1595 = vunpack.c.l.b16 %v1079
    %v1596 = vunpack.c.l.b16 %v1080
    %v1597 = vunpack.c.l.b16 %v1081
    %v1598 = vunpack.c.l.b16 %v1082
    %v1599 = vunpack.c.l.b16 %v1083
    %v1600 = vunpack.c.l.b16 %v1084
    %v1601 = vunpack.c.l.b16 %v1085
    %v1602 = vunpack.c.l.b16 %v1086
    %v1603 = vunpack.c.l.b16 %v1087
    %v1604 = vunpack.c.l.b16 %v1088
    %v1605 = vunpack.c.l.b16 %v1089
    %v1606 = vunpack.c.l.b16 %v1090
    %v1607 = vunpack.c.l.b16 %v1091
    %v1608 = vunpack.c.l.b16 %v1092
    %v1609 = vunpack.c.l.b16 %v1093
    %v1610 = vunpack.c.l.b16 %v1094
    %v1611 = vunpack.c.l.b16 %v1095
    %v1612 = vunpack.c.l.b16 %v1096
    %v1613 = vunpack.c.l.b16 %v1097
    %v1614 = vunpack.c.l.b16 %v1098
    %v1615 = vunpack.c.l.b16 %v1099
    %v1616 = vunpack.c.l.b16 %v1100
    %v1617 = vunpack.c.l.b16 %v1101
    %v1618 = vunpack.c.l.b16 %v1102
    %v1619 = vunpack.c.l.b16 %v1103
    %v1620 = vunpack.c.l.b16 %v1104
    %v1621 = vunpack.c.l.b16 %v1105
    %v1622 = vunpack.c.l.b16 %v1106
    %v1623 = vunpack.c.l.b16 %v1107
    %v1624 = vunpack.c.l.b16 %v1108
    %v1625 = vunpack.c.l.b16 %v1109
    %v1626 = vunpack.c.l.b16 %v1110
    %v1627 = vunpack.c.l.b16 %v1111
    %v1628 = vunpack.c.l.b16 %v1112
    %v1629 = vunpack.c.l.b16 %v1113
    %v1630 = vunpack.c.l.b16 %v1114
    %v1631 = vunpack.c.l.b16 %v1115
    %v1632 = vunpack.c.l.b16 %v1116
    %v1633 = vunpack.c.l.b16 %v1117
    %v1634 = vunpack.c.l.b16 %v1118
    %v1635 = vunpack.c.l.b16 %v1119
    %v1636 = vunpack.c.l.b16 %v1120
    %v1637 = vunpack.c.l.b16 %v1121
    %v1638 = vunpack.c.l.b16 %v1122
    %v1639 = vunpack.c.l.b16 %v1123
    %v1640 = vunpack.c.l.b16 %v1124
    %v1641 = vunpack.c.l.b16 %v1125
    %v1642 = vunpack.c.l.b16 %v1126
    %v1643 = vunpack.c.l.b16 %v1127
    %v1644 = vunpack.c.l.b16 %v1128
    %v1645 = vunpack.c.l.b16 %v1129
    %v1646 = vunpack.c.l.b16 %v1130
    %v1647 = vunpack.c.l.b16 %v1131
    %v1648 = vunpack.c.l.b16 %v1132
    %v1649 = vunpack.c.l.b16 %v1133
    %v1650 = vunpack.c.l.b16 %v1134
    %v1651 = vunpack.c.l.b16 %v1135
    %v1652 = vunpack.c.l.b16 %v1136
    %v1653 = vunpack.c.l.b16 %v1137
    %v1654 = vunpack.c.l.b16 %v1138
    %v1655 = vunpack.c.l.b16 %v1139
    %v1656 = vunpack.c.l.b16 %v1140
    %v1657 = vunpack.c.l.b16 %v1141
    %v1658 = vunpack.c.l.b16 %v1142
    %v1659 = vunpack.c.l.b16 %v1143
    %v1660 = vunpack.c.l.b16 %v1144
    %v1661 = vunpack.c.l.b16 %v1145
    %v1662 = vunpack.c.l.b16 %v1146
    %v1663 = vunpack.c.l.b16 %v1147
    %v1664 = vunpack.c.l.b16 %v1148
    %v1665 = vunpack.c.l.b16 %v1149
    %v1666 = vunpack.c.l.b16 %v1150
    %v1667 = vunpack.c.l.b16 %v1151
    %v1668 = vunpack.c.l.b16 %v1152
    %v1669 = vunpack.c.l.b16 %v1153
    %v1670 = vunpack.c.l.b16 %v1154
    %v1671 = vunpack.c.l.b16 %v1155
    %v1672 = vunpack.c.l.b16 %v1156
    %v1673 = vunpack.c.l.b16 %v1157
    %v1674 = vunpack.c.l.b16 %v1158
    %v1675 = vunpack.c.l.b16 %v1159
    %v1676 = vunpack.c.l.b16 %v1160
    %v1677 = vunpack.c.l.b16 %v1161
    %v1678 = vunpack.c.l.b16 %v1162
    %v1679 = vunpack.c.l.b16 %v1163
    %v1680 = vunpack.c.l.b16 %v1164
    %v1681 = vunpack.c.l.b16 %v1165
    %v1682 = vunpack.c.l.b16 %v1166
    %v1683 = vunpack.c.l.b16 %v1167
    %v1684 = vunpack.c.l.b16 %v1168
    %v1685 = vunpack.c.l.b16 %v1169
    %v1686 = vunpack.c.l.b16 %v1170
    %v1687 = vunpack.c.l.b16 %v1171
    %v1688 = vunpack.c.l.b16 %v1172
    %v1689 = vunpack.c.l.b16 %v1173
    %v1690 = vunpack.c.l.b16 %v1174
    %v1691 = vunpack.c.l.b16 %v1175
    %v1692 = vunpack.c.l.b16 %v1176
    %v1693 = vunpack.c.l.b16 %v1177
    %v1694 = vunpack.c.l.b16 %v1178
    %v1695 = vunpack.c.l.b16 %v1179
    %v1696 = vunpack.c.l.b16 %v1180
    %v1697 = vunpack.c.l.b16 %v1181
    %v1698 = vunpack.c.l.b16 %v1182
    %v1699 = vunpack.c.l.b16 %v1183
    %v1700 = vunpack.c.l.b16 %v1184
    %v1701 = vunpack.c.l.b16 %v1185
    %v1702 = vunpack.c.l.b16 %v1186
    %v1703 = vunpack.c.l.b16 %v1187
    %v1704 = vunpack.c.l.b16 %v1188
    %v1705 = vunpack.c.l.b16 %v1189
    %v1706 = vunpack.c.l.b16 %v1190
    %v1707 = vunpack.c.l.b16 %v1191
    %v1708 = vunpack.c.l.b16 %v1192
    %v1709 = vunpack.c.l.b16 %v1193
    %v1710 = vunpack.c.l.b16 %v1194
    %v1711 = vunpack.c.l.b16 %v1195
    %v1712 = vunpack.c.l.b16 %v1196
    %v1713 = vunpack.c.l.b16 %v1197
    %v1714 = vunpack.c.l.b16 %v1198
    %v1715 = vunpack.c.l.b16 %v1199
    %v1716 = vunpack.c.l.b16 %v1200
    %v1717 = vunpack.c.l.b16 %v1201
    %v1718 = vunpack.c.l.b16 %v1202
    %v1719 = vunpack.c.l.b16 %v1203
    %v1720 = vunpack.c.l.b16 %v1204
    %v1721 = vunpack.c.l.b16 %v1205
    %v1722 = vunpack.c.l.b16 %v1206
    %v1723 = vunpack.c.l.b16 %v1207
    %v1724 = vunpack.c.l.b16 %v1208
    %v1725 = vunpack.c.l.b16 %v1209
    %v1726 = vunpack.c.l.b16 %v1210
    %v1727 = vunpack.c.l.b16 %v1211
    %v1728 = vunpack.c.l.b16 %v1212
    %v1729 = vunpack.c.l.b16 %v1213
    %v1730 = vunpack.c.l.b16 %v1214
    %v1731 = vunpack.c.l.b16 %v1215
    %v1732 = vunpack.c.l.b16 %v1216
    %v1733 = vunpack.c.l.b16 %v1217
    %v1734 = vunpack.c.l.b16 %v1218
    %v1735 = vunpack.c.l.b16 %v1219
    %v1736 = vunpack.c.l.b16 %v1220
    %v1737 = vunpack.c.l.b16 %v1221
    %v1738 = vunpack.c.l.b16 %v1222
    %v1739 = vunpack.c.l.b16 %v1223
    %v1740 = vunpack.c.l.b16 %v1224
    %v1741 = vunpack.c.l.b16 %v1225
    %v1742 = vunpack.c.l.b16 %v1226
    %v1743 = vunpack.c.l.b16 %v1227
    %v1744 = vunpack.c.l.b16 %v1228
    %v1745 = vunpack.c.l.b16 %v1229
    %v1746 = vunpack.c.l.b16 %v1230
    %v1747 = vunpack.c.l.b16 %v1231
    %v1748 = vunpack.c.l.b16 %v1232
    %v1749 = vunpack.c.l.b16 %v1233
    %v1750 = vunpack.c.l.b16 %v1234
    %v1751 = vunpack.c.l.b16 %v1235
    %v1752 = vunpack.c.l.b16 %v1236
    %v1753 = vunpack.c.l.b16 %v1237
    %v1754 = vunpack.c.l.b16 %v1238
    %v1755 = vunpack.c.l.b16 %v1239
    %v1756 = vunpack.c.l.b16 %v1240
    %v1757 = vunpack.c.l.b16 %v1241
    %v1758 = vunpack.c.l.b16 %v1242
    %v1759 = vunpack.c.l.b16 %v1243
    %v1760 = vunpack.c.l.b16 %v1244
    %v1761 = vunpack.c.l.b16 %v1245
    %v1762 = vunpack.c.l.b16 %v1246
    %v1763 = vunpack.c.l.b16 %v1247
    %v1764 = vunpack.c.l.b16 %v1248
    %v1765 = vunpack.c.l.b16 %v1249
    %v1766 = vunpack.c.l.b16 %v1250
    %v1767 = vunpack.c.l.b16 %v1251
    %v1768 = vunpack.c.l.b16 %v1252
    %v1769 = vunpack.c.l.b16 %v1253
    %v1770 = vunpack.c.l.b16 %v1254
    %v1771 = vunpack.c.l.b16 %v1255
    %v1772 = vunpack.c.l.b16 %v1256
    %v1773 = vunpack.c.l.b16 %v1257
    %v1774 = vunpack.c.l.b16 %v1258
    %v1775 = vunpack.c.l.b16 %v1259
    %v1776 = vunpack.c.l.b16 %v1260
    %v1777 = vunpack.c.l.b16 %v1261
    %v1778 = vunpack.c.l.b16 %v1262
    %v1779 = vunpack.c.l.b16 %v1263
    %v1780 = vunpack.c.l.b16 %v1264
    %v1781 = vunpack.c.l.b16 %v1265
    %v1782 = vunpack.c.l.b16 %v1266
    %v1783 = vunpack.c.l.b16 %v1267
    %v1784 = vunpack.c.l.b16 %v1268
    %v1785 = vunpack.c.l.b16 %v1269
    %v1786 = vunpack.c.l.b16 %v1270
    %v1787 = vunpack.c.l.b16 %v1271
    %v1788 = vunpack.c.l.b16 %v1272
    %v1789 = vunpack.c.l.b16 %v1273
    %v1790 = vunpack.c.l.b16 %v1274
    %v1791 = vunpack.c.l.b16 %v1275
    %v1792 = vunpack.c.l.b16 %v1276
    %v1793 = vunpack.c.l.b16 %v1277
    %v1794 = vunpack.c.l.b16 %v1278
    %v1795 = vunpack.c.l.b16 %v1279
    %v1796 = vunpack.c.l.b16 %v1280
    %v1797 = vunpack.c.l.b16 %v1281
    %v1798 = vunpack.c.l.b16 %v1282
    %v1799 = vunpack.c.l.b16 %v1283
    %v1800 = vunpack.c.l.b16 %v1284
    %v1801 = vunpack.c.l.b16 %v1285
    %v1802 = vunpack.c.l.b16 %v1286
    %v1803 = vunpack.c.l.b16 %v1287
    %v1804 = vunpack.c.l.b16 %v1288
    %v1805 = vunpack.c.l.b16 %v1289
    %v1806 = vunpack.c.l.b16 %v1290
    %v1807 = vunpack.c.l.b16 %v1291
    %v1808 = vunpack.c.l.b16 %v1292
    %v1809 = vunpack.c.l.b16 %v1293
    %v1810 = vunpack.c.l.b16 %v1294
    %v1811 = vunpack.c.l.b16 %v1295
    %v1812 = vunpack.c.l.b16 %v1296
    %v1813 = vunpack.c.l.b16 %v1297
    %v1814 = vunpack.c.l.b16 %v1298
    %v1815 = vunpack.c.l.b16 %v1299
    %v1816 = vunpack.c.l.b16 %v1300
    %v1817 = vunpack.c.l.b16 %v1301
    %v1818 = vunpack.c.l.b16 %v1302
    %v1819 = vunpack.c.l.b16 %v1303
    %v1820 = vunpack.c.l.b16 %v1304
    %v1821 = vunpack.c.l.b16 %v1305
    %v1822 = vunpack.c.l.b16 %v1306
    %v1823 = vunpack.c.l.b16 %v1307
    %v1824 = vunpack.c.l.b16 %v1308
    %v1825 = vunpack.c.l.b16 %v1309
    %v1826 = vunpack.c.l.b16 %v1310
    %v1827 = vunpack.c.l.b16 %v1311
    %v1828 = vunpack.c.l.b16 %v1312
    %v1829 = vunpack.c.l.b16 %v1313
    %v1830 = vunpack.c.l.b16 %v1314
    %v1831 = vunpack.c.l.b16 %v1315
    %v1832 = vunpack.c.l.b16 %v1316
    %v1833 = vunpack.c.l.b16 %v1317
    %v1834 = vunpack.c.l.b16 %v1318
    %v1835 = vunpack.c.l.b16 %v1319
    %v1836 = vunpack.c.l.b16 %v1320
    %v1837 = vunpack.c.l.b16 %v1321
    %v1838 = vunpack.c.l.b16 %v1322
    %v1839 = vunpack.c.l.b16 %v1323
    %v1840 = vpack.c.b16 %v1585, %v1584
    %v1841 = vpack.c.b16 %v1587, %v1586
    %v1842 = vpack.c.b16 %v1589, %v1588
    %v1843 = vpack.c.b16 %v1591, %v1590
    %v1844 = vpack.c.b16 %v1593, %v1592
    %v1845 = vpack.c.b16 %v1595, %v1594
    %v1846 = vpack.c.b16 %v1597, %v1596
    %v1847 = vpack.c.b16 %v1599, %v1598
    %v1848 = vpack.c.b16 %v1601, %v1600
    %v1849 = vpack.c.b16 %v1603, %v1602
    %v1850 = vpack.c.b16 %v1605, %v1604
    %v1851 = vpack.c.b16 %v1607, %v1606
    %v1852 = vpack.c.b16 %v1609, %v1608
    %v1853 = vpack.c.b16 %v1611, %v1610
    %v1854 = vpack.c.b16 %v1613, %v1612
    %v1855 = vpack.c.b16 %v1615, %v1614
    %v1856 = vpack.c.b16 %v1617, %v1616
    %v1857 = vpack.c.b16 %v1619, %v1618
    %v1858 = vpack.c.b16 %v1621, %v1620
    %v1859 = vpack.c.b16 %v1623, %v1622
    %v1860 = vpack.c.b16 %v1625, %v1624
    %v1861 = vpack.c.b16 %v1627, %v1626
    %v1862 = vpack.c.b16 %v1629, %v1628
    %v1863 = vpack.c.b16 %v1631, %v1630
    %v1864 = vpack.c.b16 %v1633, %v1632
    %v1865 = vpack.c.b16 %v1635, %v1634
    %v1866 = vpack.c.b16 %v1637, %v1636
    %v1867 = vpack.c.b16 %v1639, %v1638
    %v1868 = vpack.c.b16 %v1641, %v1640
    %v1869 = vpack.c.b16 %v1643, %v1642
    %v1870 = vpack.c.b16 %v1645, %v1644
    %v1871 = vpack.c.b16 %v1647, %v1646
    %v1872 = vpack.c.b16 %v1649, %v1648
    %v1873 = vpack.c.b16 %v1651, %v1650
    %v1874 = vpack.c.b16 %v1653, %v1652
    %v1875 = vpack.c.b16 %v1655, %v1654
    %v1876 = vpack.c.b16 %v1657, %v1656
    %v1877 = vpack.c.b16 %v1659, %v1658
    %v1878 = vpack.c.b16 %v1661, %v1660
    %v1879 = vpack.c.b16 %v1663, %v1662
    %v1880 = vpack.c.b16 %v1665, %v1664
    %v1881 = vpack.c.b16 %v1667, %v1666
    %v1882 = vpack.c.b16 %v1669, %v1668
    %v1883 = vpack.c.b16 %v1671, %v1670
    %v1884 = vpack.c.b16 %v1673, %v1672
    %v1885 = vpack.c.b16 %v1675, %v1674
    %v1886 = vpack.c.b16 %v1677, %v1676
    %v1887 = vpack.c.b16 %v1679, %v1678
    %v1888 = vpack.c.b16 %v1681, %v1680
    %v1889 = vpack.c.b16 %v1683, %v1682
    %v1890 = vpack.c.b16 %v1685, %v1684
    %v1891 = vpack.c.b16 %v1687, %v1686
    %v1892 = vpack.c.b16 %v1689, %v1688
    %v1893 = vpack.c.b16 %v1691, %v1690
    %v1894 = vpack.c.b16 %v1693, %v1692
    %v1895 = vpack.c.b16 %v1695, %v1694
    %v1896 = vpack.c.b16 %v1697, %v1696
    %v1897 = vpack.c.b16 %v1699, %v1698
    %v1898 = vpack.c.b16 %v1701, %v1700
    %v1899 = vpack.c.b16 %v1703, %v1702
    %v1900 = vpack.c.b16 %v1705, %v1704
    %v1901 = vpack.c.b16 %v1707, %v1706
    %v1902 = vpack.c.b16 %v1709, %v1708
    %v1903 = vpack.c.b16 %v1711, %v1710
    %v1904 = vpack.c.b16 %v1713, %v1712
    %v1905 = vpack.c.b16 %v1715, %v1714
    %v1906 = vpack.c.b16 %v1717, %v1716
    %v1907 = vpack.c.b16 %v1719, %v1718
    %v1908 = vpack.c.b16 %v1721, %v1720
    %v1909 = vpack.c.b16 %v1723, %v1722
    %v1910 = vpack.c.b16 %v1725, %v1724
    %v1911 = vpack.c.b16 %v1727, %v1726
    %v1912 = vpack.c.b16 %v1729, %v1728
    %v1913 = vpack.c.b16 %v1731, %v1730
    %v1914 = vpack.c.b16 %v1733, %v1732
    %v1915 = vpack.c.b16 %v1735, %v1734
    %v1916 = vpack.c.b16 %v1737, %v1736
    %v1917 = vpack.c.b16 %v1739, %v1738
    %v1918 = vpack.c.b16 %v1741, %v1740
    %v1919 = vpack.c.b16 %v1743, %v1742
    %v1920 = vpack.c.b16 %v1745, %v1744
    %v1921 = vpack.c.b16 %v1747, %v1746
    %v1922 = vpack.c.b16 %v1749, %v1748
    %v1923 = vpack.c.b16 %v1751, %v1750
    %v1924 = vpack.c.b16 %v1753, %v1752
    %v1925 = vpack.c.b16 %v1755, %v1754
    %v1926 = vpack.c.b16 %v1757, %v1756
    %v1927 = vpack.c.b16 %v1759, %v1758
    %v1928 = vpack.c.b16 %v1761, %v1760
    %v1929 = vpack.c.b16 %v1763, %v1762
    %v1930 = vpack.c.b16 %v1765, %v1764
    %v1931 = vpack.c.b16 %v1767, %v1766
    %v1932 = vpack.c.b16 %v1769, %v1768
    %v1933 = vpack.c.b16 %v1771, %v1770
    %v1934 = vpack.c.b16 %v1773, %v1772
    %v1935 = vpack.c.b16 %v1775, %v1774
    %v1936 = vpack.c.b16 %v1777, %v1776
    %v1937 = vpack.c.b16 %v1779, %v1778
    %v1938 = vpack.c.b16 %v1781, %v1780
    %v1939 = vpack.c.b16 %v1783, %v1782
    %v1940 = vpack.c.b16 %v1785, %v1784
    %v1941 = vpack.c.b16 %v1787, %v1786
    %v1942 = vpack.c.b16 %v1789, %v1788
    %v1943 = vpack.c.b16 %v1791, %v1790
    %v1944 = vpack.c.b16 %v1793, %v1792
    %v1945 = vpack.c.b16 %v1795, %v1794
    %v1946 = vpack.c.b16 %v1797, %v1796
    %v1947 = vpack.c.b16 %v1799, %v1798
    %v1948 = vpack.c.b16 %v1801, %v1800
    %v1949 = vpack.c.b16 %v1803, %v1802
    %v1950 = vpack.c.b16 %v1805, %v1804
    %v1951 = vpack.c.b16 %v1807, %v1806
    %v1952 = vpack.c.b16 %v1809, %v1808
    %v1953 = vpack.c.b16 %v1811, %v1810
    %v1954 = vpack.c.b16 %v1813, %v1812
    %v1955 = vpack.c.b16 %v1815, %v1814
    %v1956 = vpack.c.b16 %v1817, %v1816
    %v1957 = vpack.c.b16 %v1819, %v1818
    %v1958 = vpack.c.b16 %v1821, %v1820
    %v1959 = vpack.c.b16 %v1823, %v1822
    %v1960 = vpack.c.b16 %v1825, %v1824
    %v1961 = vpack.c.b16 %v1827, %v1826
    %v1962 = vpack.c.b16 %v1829, %v1828
    %v1963 = vpack.c.b16 %v1831, %v1830
    %v1964 = vpack.c.b16 %v1833, %v1832
    %v1965 = vpack.c.b16 %v1835, %v1834
    %v1966 = vpack.c.b16 %v1837, %v1836
    %v1967 = vpack.c.b16 %v1839, %v1838
    %2096 = vmatprep.subr.bf16.mxu0 0
    %2097 = vmatpush1.bf16.msra.mxu0 %v1840
    %2098 = vmatprep.subr.bf16.mxu0 0
    %2099 = vmatpush1.bf16.msra.mxu0 %v1841
    %2100 = vmatprep.subr.bf16.mxu0 0
    %2101 = vmatpush1.bf16.msra.mxu0 %v1842
    %2102 = vmatprep.subr.bf16.mxu0 0
    %2103 = vmatpush1.bf16.msra.mxu0 %v1843
    %2104 = vmatprep.subr.bf16.mxu0 0
    %2105 = vmatpush1.bf16.msra.mxu0 %v1844
    %2106 = vmatprep.subr.bf16.mxu0 0
    %2107 = vmatpush1.bf16.msra.mxu0 %v1845
    %2108 = vmatprep.subr.bf16.mxu0 0
    %2109 = vmatpush1.bf16.msra.mxu0 %v1846
    %2110 = vmatprep.subr.bf16.mxu0 0
    %2111 = vmatpush1.bf16.msra.mxu0 %v1847
    %2112 = vmatprep.subr.bf16.mxu0 0
    %2113 = vmatpush1.bf16.msra.mxu0 %v1848
    %2114 = vmatprep.subr.bf16.mxu0 0
    %2115 = vmatpush1.bf16.msra.mxu0 %v1849
    %2116 = vmatprep.subr.bf16.mxu0 0
    %2117 = vmatpush1.bf16.msra.mxu0 %v1850
    %2118 = vmatprep.subr.bf16.mxu0 0
    %2119 = vmatpush1.bf16.msra.mxu0 %v1851
    %2120 = vmatprep.subr.bf16.mxu0 0
    %2121 = vmatpush1.bf16.msra.mxu0 %v1852
    %2122 = vmatprep.subr.bf16.mxu0 0
    %2123 = vmatpush1.bf16.msra.mxu0 %v1853
    %2124 = vmatprep.subr.bf16.mxu0 0
    %2125 = vmatpush1.bf16.msra.mxu0 %v1854
    %2126 = vmatprep.subr.bf16.mxu0 0
    %2127 = vmatpush1.bf16.msra.mxu0 %v1855
    %2128 = vmatprep.mubr.bf16.mxu0 %v1053
    %2129 = vmatmul.mubr.bf16.gmra.mrb[0].mxu0 %v1052
    %v2130 = vpop.f32.mrb[0].mxu0
    %v2131 = vadd.f32 %v1327, %v2130
    %v2132 = vpop.f32.mrb[0].mxu0
    %v2133 = vpop.f32.mrb[0].mxu0
    %v2134 = vadd.f32 %v1327, %v2133
    %v2135 = vpop.f32.mrb[0].mxu0
    %2136 = vdwg.mxu0
    %2137 = vmatprep.subr.bf16.mxu0 0
    %2138 = vmatpush1.bf16.msra.mxu0 %v1856
    %2139 = vmatprep.subr.bf16.mxu0 0
    %2140 = vmatpush1.bf16.msra.mxu0 %v1857
    %2141 = vmatprep.subr.bf16.mxu0 0
    %2142 = vmatpush1.bf16.msra.mxu0 %v1858
    %2143 = vmatprep.subr.bf16.mxu0 0
    %2144 = vmatpush1.bf16.msra.mxu0 %v1859
    %2145 = vmatprep.subr.bf16.mxu0 0
    %2146 = vmatpush1.bf16.msra.mxu0 %v1860
    %2147 = vmatprep.subr.bf16.mxu0 0
    %2148 = vmatpush1.bf16.msra.mxu0 %v1861
    %2149 = vmatprep.subr.bf16.mxu0 0
    %2150 = vmatpush1.bf16.msra.mxu0 %v1862
    %2151 = vmatprep.subr.bf16.mxu0 0
    %2152 = vmatpush1.bf16.msra.mxu0 %v1863
    %2153 = vmatprep.subr.bf16.mxu0 0
    %2154 = vmatpush1.bf16.msra.mxu0 %v1864
    %2155 = vmatprep.subr.bf16.mxu0 0
    %2156 = vmatpush1.bf16.msra.mxu0 %v1865
    %2157 = vmatprep.subr.bf16.mxu0 0
    %2158 = vmatpush1.bf16.msra.mxu0 %v1866
    %2159 = vmatprep.subr.bf16.mxu0 0
    %2160 = vmatpush1.bf16.msra.mxu0 %v1867
    %2161 = vmatprep.subr.bf16.mxu0 0
    %2162 = vmatpush1.bf16.msra.mxu0 %v1868
    %2163 = vmatprep.subr.bf16.mxu0 0
    %2164 = vmatpush1.bf16.msra.mxu0 %v1869
    %2165 = vmatprep.subr.bf16.mxu0 0
    %2166 = vmatpush1.bf16.msra.mxu0 %v1870
    %2167 = vmatprep.subr.bf16.mxu0 0
    %2168 = vmatpush1.bf16.msra.mxu0 %v1871
    %2169 = vmatprep.mubr.bf16.mxu0 %v1055
    %2170 = vmatmul.mubr.bf16.gmra.mrb[0].mxu0 %v1054
    %v2171 = vpop.f32.mrb[0].mxu0
    %v2172 = vadd.f32 %v2131, %v2171
    %v2173 = vpop.f32.mrb[0].mxu0
    %v2174 = vpop.f32.mrb[0].mxu0
    %v2175 = vadd.f32 %v2134, %v2174
    %v2176 = vpop.f32.mrb[0].mxu0
    %2177 = vdwg.mxu0
    %2178 = vmatprep.subr.bf16.mxu0 0
    %2179 = vmatpush1.bf16.msra.mxu0 %v1872
    %2180 = vmatprep.subr.bf16.mxu0 0
    %2181 = vmatpush1.bf16.msra.mxu0 %v1873
    %2182 = vmatprep.subr.bf16.mxu0 0
    %2183 = vmatpush1.bf16.msra.mxu0 %v1874
    %2184 = vmatprep.subr.bf16.mxu0 0
    %2185 = vmatpush1.bf16.msra.mxu0 %v1875
    %2186 = vmatprep.subr.bf16.mxu0 0
    %2187 = vmatpush1.bf16.msra.mxu0 %v1876
    %2188 = vmatprep.subr.bf16.mxu0 0
    %2189 = vmatpush1.bf16.msra.mxu0 %v1877
    %2190 = vmatprep.subr.bf16.mxu0 0
    %2191 = vmatpush1.bf16.msra.mxu0 %v1878
    %2192 = vmatprep.subr.bf16.mxu0 0
    %2193 = vmatpush1.bf16.msra.mxu0 %v1879
    %2194 = vmatprep.subr.bf16.mxu0 0
    %2195 = vmatpush1.bf16.msra.mxu0 %v1880
    %2196 = vmatprep.subr.bf16.mxu0 0
    %2197 = vmatpush1.bf16.msra.mxu0 %v1881
    %2198 = vmatprep.subr.bf16.mxu0 0
    %2199 = vmatpush1.bf16.msra.mxu0 %v1882
    %2200 = vmatprep.subr.bf16.mxu0 0
    %2201 = vmatpush1.bf16.msra.mxu0 %v1883
    %2202 = vmatprep.subr.bf16.mxu0 0
    %2203 = vmatpush1.bf16.msra.mxu0 %v1884
    %2204 = vmatprep.subr.bf16.mxu0 0
    %2205 = vmatpush1.bf16.msra.mxu0 %v1885
    %2206 = vmatprep.subr.bf16.mxu0 0
    %2207 = vmatpush1.bf16.msra.mxu0 %v1886
    %2208 = vmatprep.subr.bf16.mxu0 0
    %2209 = vmatpush1.bf16.msra.mxu0 %v1887
    %2210 = vmatprep.mubr.bf16.mxu0 %v1057
    %2211 = vmatmul.mubr.bf16.gmra.mrb[0].mxu0 %v1056
    %v2212 = vpop.f32.mrb[0].mxu0
    %v2213 = vadd.f32 %v2172, %v2212
    %v2214 = vpop.f32.mrb[0].mxu0
    %v2215 = vpop.f32.mrb[0].mxu0
    %v2216 = vadd.f32 %v2175, %v2215
    %v2217 = vpop.f32.mrb[0].mxu0
    %2218 = vdwg.mxu0
    %2219 = vmatprep.subr.bf16.mxu0 0
    %2220 = vmatpush1.bf16.msra.mxu0 %v1888
    %2221 = vmatprep.subr.bf16.mxu0 0
    %2222 = vmatpush1.bf16.msra.mxu0 %v1889
    %2223 = vmatprep.subr.bf16.mxu0 0
    %2224 = vmatpush1.bf16.msra.mxu0 %v1890
    %2225 = vmatprep.subr.bf16.mxu0 0
    %2226 = vmatpush1.bf16.msra.mxu0 %v1891
    %2227 = vmatprep.subr.bf16.mxu0 0
    %2228 = vmatpush1.bf16.msra.mxu0 %v1892
    %2229 = vmatprep.subr.bf16.mxu0 0
    %2230 = vmatpush1.bf16.msra.mxu0 %v1893
    %2231 = vmatprep.subr.bf16.mxu0 0
    %2232 = vmatpush1.bf16.msra.mxu0 %v1894
    %2233 = vmatprep.subr.bf16.mxu0 0
    %2234 = vmatpush1.bf16.msra.mxu0 %v1895
    %2235 = vmatprep.subr.bf16.mxu0 0
    %2236 = vmatpush1.bf16.msra.mxu0 %v1896
    %2237 = vmatprep.subr.bf16.mxu0 0
    %2238 = vmatpush1.bf16.msra.mxu0 %v1897
    %2239 = vmatprep.subr.bf16.mxu0 0
    %2240 = vmatpush1.bf16.msra.mxu0 %v1898
    %2241 = vmatprep.subr.bf16.mxu0 0
    %2242 = vmatpush1.bf16.msra.mxu0 %v1899
    %2243 = vmatprep.subr.bf16.mxu0 0
    %2244 = vmatpush1.bf16.msra.mxu0 %v1900
    %2245 = vmatprep.subr.bf16.mxu0 0
    %2246 = vmatpush1.bf16.msra.mxu0 %v1901
    %2247 = vmatprep.subr.bf16.mxu0 0
    %2248 = vmatpush1.bf16.msra.mxu0 %v1902
    %2249 = vmatprep.subr.bf16.mxu0 0
    %2250 = vmatpush1.bf16.msra.mxu0 %v1903
    %2251 = vmatprep.mubr.bf16.mxu0 %v1059
    %2252 = vmatmul.mubr.bf16.gmra.mrb[0].mxu0 %v1058
    %v2253 = vpop.f32.mrb[0].mxu0
    %v2254 = vadd.f32 %v2213, %v2253
    %v2255 = vpop.f32.mrb[0].mxu0
    %v2256 = vpop.f32.mrb[0].mxu0
    %v2257 = vadd.f32 %v2216, %v2256
    %v2258 = vpop.f32.mrb[0].mxu0
    %2259 = vdwg.mxu0
    %2260 = vmatprep.subr.bf16.mxu0 0
    %2261 = vmatpush1.bf16.msra.mxu0 %v1904
    %2262 = vmatprep.subr.bf16.mxu0 0
    %2263 = vmatpush1.bf16.msra.mxu0 %v1905
    %2264 = vmatprep.subr.bf16.mxu0 0
    %2265 = vmatpush1.bf16.msra.mxu0 %v1906
    %2266 = vmatprep.subr.bf16.mxu0 0
    %2267 = vmatpush1.bf16.msra.mxu0 %v1907
    %2268 = vmatprep.subr.bf16.mxu0 0
    %2269 = vmatpush1.bf16.msra.mxu0 %v1908
    %2270 = vmatprep.subr.bf16.mxu0 0
    %2271 = vmatpush1.bf16.msra.mxu0 %v1909
    %2272 = vmatprep.subr.bf16.mxu0 0
    %2273 = vmatpush1.bf16.msra.mxu0 %v1910
    %2274 = vmatprep.subr.bf16.mxu0 0
    %2275 = vmatpush1.bf16.msra.mxu0 %v1911
    %2276 = vmatprep.subr.bf16.mxu0 0
    %2277 = vmatpush1.bf16.msra.mxu0 %v1912
    %2278 = vmatprep.subr.bf16.mxu0 0
    %2279 = vmatpush1.bf16.msra.mxu0 %v1913
    %2280 = vmatprep.subr.bf16.mxu0 0
    %2281 = vmatpush1.bf16.msra.mxu0 %v1914
    %2282 = vmatprep.subr.bf16.mxu0 0
    %2283 = vmatpush1.bf16.msra.mxu0 %v1915
    %2284 = vmatprep.subr.bf16.mxu0 0
    %2285 = vmatpush1.bf16.msra.mxu0 %v1916
    %2286 = vmatprep.subr.bf16.mxu0 0
    %2287 = vmatpush1.bf16.msra.mxu0 %v1917
    %2288 = vmatprep.subr.bf16.mxu0 0
    %2289 = vmatpush1.bf16.msra.mxu0 %v1918
    %2290 = vmatprep.subr.bf16.mxu0 0
    %2291 = vmatpush1.bf16.msra.mxu0 %v1919
    %2292 = vmatprep.mubr.bf16.mxu0 %v1061
    %2293 = vmatmul.mubr.bf16.gmra.mrb[0].mxu0 %v1060
    %v2294 = vpop.f32.mrb[0].mxu0
    %v2295 = vadd.f32 %v2254, %v2294
    %v2296 = vpop.f32.mrb[0].mxu0
    %v2297 = vpop.f32.mrb[0].mxu0
    %v2298 = vadd.f32 %v2257, %v2297
    %v2299 = vpop.f32.mrb[0].mxu0
    %2300 = vdwg.mxu0
    %2301 = vmatprep.subr.bf16.mxu0 0
    %2302 = vmatpush1.bf16.msra.mxu0 %v1920
    %2303 = vmatprep.subr.bf16.mxu0 0
    %2304 = vmatpush1.bf16.msra.mxu0 %v1921
    %2305 = vmatprep.subr.bf16.mxu0 0
    %2306 = vmatpush1.bf16.msra.mxu0 %v1922
    %2307 = vmatprep.subr.bf16.mxu0 0
    %2308 = vmatpush1.bf16.msra.mxu0 %v1923
    %2309 = vmatprep.subr.bf16.mxu0 0
    %2310 = vmatpush1.bf16.msra.mxu0 %v1924
    %2311 = vmatprep.subr.bf16.mxu0 0
    %2312 = vmatpush1.bf16.msra.mxu0 %v1925
    %2313 = vmatprep.subr.bf16.mxu0 0
    %2314 = vmatpush1.bf16.msra.mxu0 %v1926
    %2315 = vmatprep.subr.bf16.mxu0 0
    %2316 = vmatpush1.bf16.msra.mxu0 %v1927
    %2317 = vmatprep.subr.bf16.mxu0 0
    %2318 = vmatpush1.bf16.msra.mxu0 %v1928
    %2319 = vmatprep.subr.bf16.mxu0 0
    %2320 = vmatpush1.bf16.msra.mxu0 %v1929
    %2321 = vmatprep.subr.bf16.mxu0 0
    %2322 = vmatpush1.bf16.msra.mxu0 %v1930
    %2323 = vmatprep.subr.bf16.mxu0 0
    %2324 = vmatpush1.bf16.msra.mxu0 %v1931
    %2325 = vmatprep.subr.bf16.mxu0 0
    %2326 = vmatpush1.bf16.msra.mxu0 %v1932
    %2327 = vmatprep.subr.bf16.mxu0 0
    %2328 = vmatpush1.bf16.msra.mxu0 %v1933
    %2329 = vmatprep.subr.bf16.mxu0 0
    %2330 = vmatpush1.bf16.msra.mxu0 %v1934
    %2331 = vmatprep.subr.bf16.mxu0 0
    %2332 = vmatpush1.bf16.msra.mxu0 %v1935
    %2333 = vmatprep.mubr.bf16.mxu0 %v1063
    %2334 = vmatmul.mubr.bf16.gmra.mrb[0].mxu0 %v1062
    %v2335 = vpop.f32.mrb[0].mxu0
    %v2336 = vadd.f32 %v2295, %v2335
    %v2337 = vpop.f32.mrb[0].mxu0
    %v2338 = vpop.f32.mrb[0].mxu0
    %v2339 = vadd.f32 %v2298, %v2338
    %v2340 = vpop.f32.mrb[0].mxu0
    %2341 = vdwg.mxu0
    %2342 = vmatprep.subr.bf16.mxu0 0
    %2343 = vmatpush1.bf16.msra.mxu0 %v1936
    %2344 = vmatprep.subr.bf16.mxu0 0
    %2345 = vmatpush1.bf16.msra.mxu0 %v1937
    %2346 = vmatprep.subr.bf16.mxu0 0
    %2347 = vmatpush1.bf16.msra.mxu0 %v1938
    %2348 = vmatprep.subr.bf16.mxu0 0
    %2349 = vmatpush1.bf16.msra.mxu0 %v1939
    %2350 = vmatprep.subr.bf16.mxu0 0
    %2351 = vmatpush1.bf16.msra.mxu0 %v1940
    %2352 = vmatprep.subr.bf16.mxu0 0
    %2353 = vmatpush1.bf16.msra.mxu0 %v1941
    %2354 = vmatprep.subr.bf16.mxu0 0
    %2355 = vmatpush1.bf16.msra.mxu0 %v1942
    %2356 = vmatprep.subr.bf16.mxu0 0
    %2357 = vmatpush1.bf16.msra.mxu0 %v1943
    %2358 = vmatprep.subr.bf16.mxu0 0
    %2359 = vmatpush1.bf16.msra.mxu0 %v1944
    %2360 = vmatprep.subr.bf16.mxu0 0
    %2361 = vmatpush1.bf16.msra.mxu0 %v1945
    %2362 = vmatprep.subr.bf16.mxu0 0
    %2363 = vmatpush1.bf16.msra.mxu0 %v1946
    %2364 = vmatprep.subr.bf16.mxu0 0
    %2365 = vmatpush1.bf16.msra.mxu0 %v1947
    %2366 = vmatprep.subr.bf16.mxu0 0
    %2367 = vmatpush1.bf16.msra.mxu0 %v1948
    %2368 = vmatprep.subr.bf16.mxu0 0
    %2369 = vmatpush1.bf16.msra.mxu0 %v1949
    %2370 = vmatprep.subr.bf16.mxu0 0
    %2371 = vmatpush1.bf16.msra.mxu0 %v1950
    %2372 = vmatprep.subr.bf16.mxu0 0
    %2373 = vmatpush1.bf16.msra.mxu0 %v1951
    %2374 = vmatprep.mubr.bf16.mxu0 %v1065
    %2375 = vmatmul.mubr.bf16.gmra.mrb[0].mxu0 %v1064
    %v2376 = vpop.f32.mrb[0].mxu0
    %v2377 = vadd.f32 %v2336, %v2376
    %v2378 = vpop.f32.mrb[0].mxu0
    %v2379 = vpop.f32.mrb[0].mxu0
    %v2380 = vadd.f32 %v2339, %v2379
    %v2381 = vpop.f32.mrb[0].mxu0
    %2382 = vdwg.mxu0
    %2383 = vmatprep.subr.bf16.mxu0 0
    %2384 = vmatpush1.bf16.msra.mxu0 %v1952
    %2385 = vmatprep.subr.bf16.mxu0 0
    %2386 = vmatpush1.bf16.msra.mxu0 %v1953
    %2387 = vmatprep.subr.bf16.mxu0 0
    %2388 = vmatpush1.bf16.msra.mxu0 %v1954
    %2389 = vmatprep.subr.bf16.mxu0 0
    %2390 = vmatpush1.bf16.msra.mxu0 %v1955
    %2391 = vmatprep.subr.bf16.mxu0 0
    %2392 = vmatpush1.bf16.msra.mxu0 %v1956
    %2393 = vmatprep.subr.bf16.mxu0 0
    %2394 = vmatpush1.bf16.msra.mxu0 %v1957
    %2395 = vmatprep.subr.bf16.mxu0 0
    %2396 = vmatpush1.bf16.msra.mxu0 %v1958
    %2397 = vmatprep.subr.bf16.mxu0 0
    %2398 = vmatpush1.bf16.msra.mxu0 %v1959
    %2399 = vmatprep.subr.bf16.mxu0 0
    %2400 = vmatpush1.bf16.msra.mxu0 %v1960
    %2401 = vmatprep.subr.bf16.mxu0 0
    %2402 = vmatpush1.bf16.msra.mxu0 %v1961
    %2403 = vmatprep.subr.bf16.mxu0 0
    %2404 = vmatpush1.bf16.msra.mxu0 %v1962
    %2405 = vmatprep.subr.bf16.mxu0 0
    %2406 = vmatpush1.bf16.msra.mxu0 %v1963
    %2407 = vmatprep.subr.bf16.mxu0 0
    %2408 = vmatpush1.bf16.msra.mxu0 %v1964
    %2409 = vmatprep.subr.bf16.mxu0 0
    %2410 = vmatpush1.bf16.msra.mxu0 %v1965
    %2411 = vmatprep.subr.bf16.mxu0 0
    %2412 = vmatpush1.bf16.msra.mxu0 %v1966
    %2413 = vmatprep.subr.bf16.mxu0 0
    %2414 = vmatpush1.bf16.msra.mxu0 %v1967
    %2415 = vmatprep.mubr.bf16.mxu0 %v1067
    %2416 = vmatmul.mubr.bf16.gmra.mrb[0].mxu0 %v1066
    %v2417 = vpop.f32.mrb[0].mxu0
    %v2418 = vadd.f32 %v2377, %v2417
    %v2419 = vpop.f32.mrb[0].mxu0
    %v2420 = vpop.f32.mrb[0].mxu0
    %v2421 = vadd.f32 %v2380, %v2420
    %v2422 = vpop.f32.mrb[0].mxu0
    %2423 = vdwg.mxu0
    %v2424 = vadd.f32 %v394, %v2418
    %v2425 = vadd.f32 %v395, %v2421
    %v2426 = vsel %vm128, %v2424, 0.0
    %2427 = vadd.xlane.f32.xlu0 %v2426
    %v2428 = vpop.xlane.xlu0 %2427
    %v2429 = vsel %vm128, %v2425, 0.0
    %2430 = vadd.xlane.f32.xlu0 %v2429
    %v2431 = vpop.xlane.xlu0 %2430
    %v2432 = vmul.f32 %v2428, %v363
    %v2433 = vmul.f32 %v2431, %v363
    %v2434 = vsub.f32 %v2424, %v2432
    %v2435 = vsub.f32 %v2425, %v2433
    %v2436 = vmul.f32 %v2434, %v2434
    %v2437 = vmul.f32 %v2435, %v2435
    %v2438 = vsel %vm128, %v2436, 0.0
    %2439 = vadd.xlane.f32.xlu0 %v2438
    %v2440 = vpop.xlane.xlu0 %2439
    %v2441 = vsel %vm128, %v2437, 0.0
    %2442 = vadd.xlane.f32.xlu0 %v2441
    %v2443 = vpop.xlane.xlu0 %2442
    %v2444 = vmul.f32 %v2440, %v363
    %v2445 = vmul.f32 %v2443, %v363
    %v2446 = vadd.f32 %v2444, 1e-05
    %v2447 = vadd.f32 %v2445, 1e-05
    %v2448 = vrsqrt.pop %v2446
    %v2449 = vrsqrt.pop %v2447
    %v2450 = vmul.f32 %v2434, %v2448
    %v2451 = vmul.f32 %v2435, %v2449
    %2452 = vrot.lane.b32.xlu0 %v387, 64
    %v2453 = vpop.permute.xlu0 %2452
    %v2455 = vmul.f32 %v2450, %v2453
    %v2456 = vmul.f32 %v2451, %v2453
    %2457 = vrot.lane.b32.xlu0 %v387, 32
    %v2458 = vpop.permute.xlu0 %2457
    %v2460 = vadd.f32 %v2455, %v2458
    %v2461 = vadd.f32 %v2456, %v2458
    %v2462 = vpack.c.bf16 %v2461, %v2460
    %v2463 = vlaneseq
    %v2464 = vshrl.u32 %v2463, 7
    %v2465 = vsub.s32 0, %v2464
    %v2466 = vrot.slane %v108, %v2465
    %v2470 = vsel %vm128, %v2462, 0
    %2472 = vmatprep.subr.bf16.mxu0 0
    %2473 = vmatpush1.bf16.msra.mxu0 %v191
    %2474 = vmatprep.subr.bf16.mxu0 0
    %2475 = vmatpush1.bf16.msra.mxu0 %v192
    %2476 = vmatprep.subr.bf16.mxu0 0
    %2477 = vmatpush1.bf16.msra.mxu0 0
    %2478 = vmatprep.subr.bf16.mxu0 0
    %2479 = vmatpush1.bf16.msra.mxu0 0
    %2480 = vmatprep.subr.bf16.mxu0 0
    %2481 = vmatpush1.bf16.msra.mxu0 0
    %2482 = vmatprep.subr.bf16.mxu0 0
    %2483 = vmatpush1.bf16.msra.mxu0 0
    %2484 = vmatprep.subr.bf16.mxu0 0
    %2485 = vmatpush1.bf16.msra.mxu0 0
    %2486 = vmatprep.subr.bf16.mxu0 0
    %2487 = vmatpush1.bf16.msra.mxu0 0
    %2488 = vmatprep.subr.bf16.mxu0 0
    %2489 = vmatpush1.bf16.msra.mxu0 0
    %2490 = vmatprep.subr.bf16.mxu0 0
    %2491 = vmatpush1.bf16.msra.mxu0 0
    %2492 = vmatprep.subr.bf16.mxu0 0
    %2493 = vmatpush1.bf16.msra.mxu0 0
    %2494 = vmatprep.subr.bf16.mxu0 0
    %2495 = vmatpush1.bf16.msra.mxu0 0
    %2496 = vmatprep.subr.bf16.mxu0 0
    %2497 = vmatpush1.bf16.msra.mxu0 0
    %2498 = vmatprep.subr.bf16.mxu0 0
    %2499 = vmatpush1.bf16.msra.mxu0 0
    %2500 = vmatprep.subr.bf16.mxu0 0
    %2501 = vmatpush1.bf16.msra.mxu0 0
    %2502 = vmatprep.subr.bf16.mxu0 0
    %2503 = vmatpush1.bf16.msra.mxu0 0
    %2504 = vmatprep.mubr.bf16.mxu0 0
    %2505 = vmatmul.mubr.bf16.gmra.mrb[0].mxu0 %v2470
    %v2506 = vpop.f32.mrb[0].mxu0
    %v2507 = vadd.f32 %v2466, %v2506
    %v2508 = vpop.f32.mrb[0].mxu0
    %v2509 = vpop.f32.mrb[0].mxu0
    %v2510 = vadd.f32 %v2466, %v2509
    %v2511 = vpop.f32.mrb[0].mxu0
    %2512 = vdwg.mxu0
    %vm2513 = vcmask 64512
    %2514 = vst.msk [vmem:[#allocation13] sm:$0xff] %vm2513, %v2507
    %2515 = vst.msk [vmem:[#allocation13 + $0x8] sm:$0xff] %vm2513, %v2510
    // Predicated region
    $region50: #{tpu_custom_call.1} parent=1 // pred_check
      _
    $region51: #{tpu_custom_call.1} parent=1 // pred_check_branch
      %2517 = sbr.rel (0) target = $region53
    $region52: #{tpu_custom_call.1} parent=1 // pred_region
      %s2519 = ssub.s32 256, 256
      %2520 = vsyncadd [#allocation4], %s2519
      %s2521 = sshll.u32 [#allocation13], 4
      %s2522 = int_to_ptr.vmem [resolvable:$true] %s2521
      %2527 = dma.vmem_to_hbm [thread:$0]  %s2522, 256, %s6, [#allocation4], 128, 128, 8
    $region53: #{tpu_custom_call.1} parent=1 // pred_fallthru
      _
    // Predicated region
    $region54: #{tpu_custom_call.1} parent=1 // pred_check
      _
    $region55: #{tpu_custom_call.1} parent=1 // pred_check_branch
      %2529 = sbr.rel (0) target = $region57
    $region56: #{tpu_custom_call.1} parent=1 // pred_region
      %2530 = dma.done [#allocation4], 256
    $region57: #{tpu_custom_call.1} parent=1 // pred_fallthru
      _
    %2531 = vsyncpa [#allocation3], 1
    %2532 = vsyncpa [#allocation6], 1
    %2533 = vsyncpa [#allocation9], 1
    %2534 = vsyncpa [#allocation12], 1
    %2535 = vsyncpa [#allocation4], 1

</llo_original>
